<compile_context>
chip_gen: v5e
topology: v5e:2x2
jax: 0.10.0
libtpu: 0.0.40
codegen_flags: <defaults>
</compile_context>

<pallas_src>
import functools
import math

import jax
import jax.numpy as jnp
from jax.experimental import pallas as pl
from jax.experimental.pallas import tpu as pltpu


# ----------------------------------------------------------------------------
# Pallas kernel: grid = (num_time_chunks,), both directions fused per step.
#   xw_f_ref : (Tc, B, 4H)  forward  x_t @ W_ih^T + bias (gate order [i,f,o,g])
#   xw_b_ref : (Tc, B, 4H)  backward chunk (original time order; walked in reverse)
#   whh_ref  : (2, H, 4H)   recurrent weights for both directions (resident)
#   y_f_ref  : (Tc, B, H)   forward per-step hidden outputs for this chunk
#   y_b_ref  : (Tc, B, H)   backward per-step hidden outputs for this chunk
#   cn_ref   : (2, B, H)    final cell states (written at the last chunk)
#   h_sc/c_sc: (2, B, H)    persistent VMEM scratch carrying both recurrences
#                           across chunks (relies on the single grid axis being
#                           "arbitrary" / sequential -- do NOT mark it parallel).
# ----------------------------------------------------------------------------
def lstm_chunk_kernel(xw_f_ref, xw_b_ref, whh_ref, y_f_ref, y_b_ref, cn_ref,
                      h_sc, c_sc, *, seq_len, num_chunks):
    t = pl.program_id(0)
    Tc, _, H4 = xw_f_ref.shape
    H = H4 // 4

    @pl.when(t == 0)
    def _():
        h_sc[...] = jnp.zeros_like(h_sc)
        c_sc[...] = jnp.zeros_like(c_sc)

    whh = whh_ref[...]                       # (2, H, 4H), compute dtype (bf16 in prod)

    # Static: does this launch contain padded time steps at all?
    need_mask = (num_chunks * Tc) > seq_len
    if need_mask:
        # Only the forward direction needs masking (its pad steps come after the
        # real data).  Backward pad steps are processed first from a zero state
        # and zero xw, which is an exact fixed point of the cell -> no mask needed.
        dir_is_bwd = jax.lax.broadcasted_iota(jnp.int32, (2, 1, 1), 0) == 1

    def step(s, carry):
        h, c = carry                                            # (2, B, H) f32 each
        idx_b = Tc - 1 - s                                      # backward walks its chunk in reverse

        # Batched recurrent matmul: bf16 operands, f32 accumulation on the MXU.
        hh = jnp.einsum('dbh,dhg->dbg', h.astype(whh.dtype), whh,
                        preferred_element_type=jnp.float32)     # (2, B, 4H)
        xw = jnp.stack([xw_f_ref[s], xw_b_ref[idx_b]], axis=0).astype(jnp.float32)
        gates = hh + xw                                         # (2, B, 4H)

        ifo = jax.nn.sigmoid(gates[..., :3 * H])                # [i, f, o] slab
        g = jnp.tanh(gates[..., 3 * H:])                        # g slab
        c_new = ifo[..., H:2 * H] * c + ifo[..., :H] * g
        h_new = ifo[..., 2 * H:3 * H] * jnp.tanh(c_new)

        if need_mask:
            p = t * Tc + s                                      # global step index
            keep = jnp.logical_or(dir_is_bwd, p < seq_len)      # (2, 1, 1)
            h_new = jnp.where(keep, h_new, h)
            c_new = jnp.where(keep, c_new, c)

        y_f_ref[s] = h_new[0]
        y_b_ref[idx_b] = h_new[1]
        return h_new, c_new

    # Partial unroll: keeps the scalar-loop overhead hidden without vreg spills.
    h, c = jax.lax.fori_loop(0, Tc, step, (h_sc[...], c_sc[...]),
                             unroll=min(Tc, 8))
    h_sc[...] = h
    c_sc[...] = c

    @pl.when(t == num_chunks - 1)
    def _():
        cn_ref[...] = c


# ----------------------------------------------------------------------------
# Sizing helpers (tile-padded estimates: sublane=8, lane=128)
# ----------------------------------------------------------------------------
def _round_up(x, m):
    return ((x + m - 1) // m) * m


def _pick_time_chunk(T, B, H, xw_bytes, budget_bytes=8 << 20, max_chunk=128):
    """Chunk length so the double-buffered streamed working set stays ~budget."""
    Bp = _round_up(B, 8)
    Hp = _round_up(H, 128)
    H4p = _round_up(4 * H, 128)
    per_step = 2 * (2 * Bp * H4p * xw_bytes + 2 * Bp * Hp * 4)   # xw + y, both dirs, x2 bufs
    tc = max(1, budget_bytes // per_step)
    return int(max(1, min(tc, max_chunk, T)))


def _vmem_limit_bytes(Tc, B, H, xw_bytes):
    Bp = _round_up(B, 8)
    Hp = _round_up(H, 128)
    H4p = _round_up(4 * H, 128)
    Hs = _round_up(H, 8)
    stream = 2 * (2 * Tc * Bp * H4p * xw_bytes + 2 * Tc * Bp * Hp * 4)
    whh = 2 * 2 * Hs * H4p * xw_bytes
    state = 6 * Bp * Hp * 4
    total = int((stream + whh + state) * 1.25) + (2 << 20)
    return int(min(max(total, 32 << 20), 64 << 20))


def lstm_recurrent_pallas(xw_f, xw_b, whh, hidden_size, seq_len, time_chunk=None):
    """Run the fused bidirectional recurrence.

    xw_f, xw_b : (T_pad, B, 4H) precomputed input projections (+bias), [i,f,o,g]
    whh        : (2, H, 4H)     recurrent weights (transposed, gate-reordered)
    returns y_f, y_b: (T_pad, B, H) f32, cn: (2, B, H) f32
    """
    T_pad, B, H4 = xw_f.shape
    H = hidden_size
    xw_bytes = jnp.dtype(xw_f.dtype).itemsize

    Tc = time_chunk if time_chunk is not None else _pick_time_chunk(T_pad, B, H, xw_bytes)
    nT = T_pad // Tc
    assert nT * Tc == T_pad

    kernel = functools.partial(lstm_chunk_kernel, seq_len=seq_len, num_chunks=nT)

    y_f, y_b, cn = pl.pallas_call(
        kernel,
        grid=(nT,),
        in_specs=[
            pl.BlockSpec((Tc, B, H4), lambda t: (t, 0, 0)),           # forward xw chunk
            pl.BlockSpec((Tc, B, H4), lambda t: (nT - 1 - t, 0, 0)),  # backward xw chunk
            pl.BlockSpec((2, H, H4), lambda t: (0, 0, 0)),            # resident W_hh
        ],
        out_specs=[
            pl.BlockSpec((Tc, B, H), lambda t: (t, 0, 0)),
            pl.BlockSpec((Tc, B, H), lambda t: (nT - 1 - t, 0, 0)),
            pl.BlockSpec((2, B, H), lambda t: (0, 0, 0)),
        ],
        out_shape=[
            jax.ShapeDtypeStruct((T_pad, B, H), jnp.float32),
            jax.ShapeDtypeStruct((T_pad, B, H), jnp.float32),
            jax.ShapeDtypeStruct((2, B, H), jnp.float32),
        ],
        scratch_shapes=[
            pltpu.VMEM((2, B, H), jnp.float32),   # h state (both dirs, persists across chunks)
            pltpu.VMEM((2, B, H), jnp.float32),   # c state
        ],
        compiler_params=pltpu.CompilerParams(
            # Single sequential time-chunk axis: MUST stay "arbitrary" because the
            # h/c scratch and the resident cn output carry state across it.
            dimension_semantics=("arbitrary",),
            vmem_limit_bytes=_vmem_limit_bytes(Tc, B, H, xw_bytes),
        ),
    )(xw_f, xw_b, whh)
    return y_f, y_b, cn


# ----------------------------------------------------------------------------
# TemporalLSTM forward (multi-layer, bidirectional), glue in plain JAX
# ----------------------------------------------------------------------------
def _reorder_gates(w):
    """PyTorch gate-block order [i, f, g, o] -> [i, f, o, g] along axis 0."""
    H = w.shape[0] // 4
    return jnp.concatenate([w[:H], w[H:2 * H], w[3 * H:], w[2 * H:3 * H]], axis=0)


def temporal_lstm_forward(x_bti, params, num_layers, hidden_size,
                          bidirectional=True, compute_dtype=jnp.bfloat16,
                          time_chunk=None):
    assert bidirectional, "fused Pallas path implements the bidirectional module"
    x = jnp.transpose(x_bti, (1, 0, 2)).astype(jnp.float32)   # (T, B, I)
    T, B, _ = x.shape
    H = hidden_size

    h_list, c_list = [], []
    layer_in = x
    for layer in range(num_layers):
        wih_l, whh_l, b_l = [], [], []
        for d in range(2):
            w_ih, w_hh, b_ih, b_hh = params[(layer, d)]
            wih_l.append(jnp.transpose(_reorder_gates(w_ih)))      # (I, 4H)
            whh_l.append(jnp.transpose(_reorder_gates(w_hh)))      # (H, 4H)
            b_l.append(_reorder_gates(b_ih + b_hh))                # (4H,)
        wih = jnp.stack(wih_l)                                     # (2, I, 4H)
        whh = jnp.stack(whh_l).astype(compute_dtype)               # (2, H, 4H)
        bias = jnp.stack(b_l)                                      # (2, 4H)

        # Hoisted input projection (one big MXU matmul per direction), then bf16 stream.
        xw = (jnp.einsum('tbi,dig->dtbg', layer_in, wih)
              + bias[:, None, None, :]).astype(compute_dtype)      # (2, T, B, 4H)

        # Pad time to a multiple of the chunk with zeros (zero xw + zero state is a
        # fixed point of the cell, so backward pad steps are exact no-ops).
        xw_bytes = jnp.dtype(compute_dtype).itemsize
        Tc = time_chunk if time_chunk is not None else _pick_time_chunk(T, B, H, xw_bytes)
        T_pad = pl.cdiv(T, Tc) * Tc
        if T_pad != T:
            xw = jnp.pad(xw, ((0, 0), (0, T_pad - T), (0, 0), (0, 0)))

        y_f, y_b, cn = lstm_recurrent_pallas(xw[0], xw[1], whh, H, T, time_chunk=Tc)
        y_f, y_b = y_f[:T], y_b[:T]

        # h_n derived from y: forward -> last real step, backward -> time step 0.
        h_list.append(y_f[T - 1])
        c_list.append(cn[0])
        h_list.append(y_b[0])
        c_list.append(cn[1])

        layer_in = jnp.concatenate([y_f, y_b], axis=-1)            # (T, B, 2H)
        # inter-layer dropout: identity at inference

    output = jnp.transpose(layer_in, (1, 0, 2))                    # (B, T, 2H)
    h_n = jnp.stack(h_list, axis=0)                                # (L*2, B, H)
    c_n = jnp.stack(c_list, axis=0)
    # output-level self.dropout: identity at inference
    return output, (h_n, c_n)


# ----------------------------------------------------------------------------
# Pure-JAX reference (for correctness check)  -- PyTorch gate order [i,f,g,o]
# ----------------------------------------------------------------------------
def _lstm_dir_ref(x_tbi, w_ih, w_hh, b_ih, b_hh, reverse):
    T, B, _ = x_tbi.shape
    H = w_hh.shape[1]
    h = jnp.zeros((B, H), jnp.float32)
    c = jnp.zeros((B, H), jnp.float32)
    ys = [None] * T
    trange = range(T - 1, -1, -1) if reverse else range(T)
    for t in trange:
        g = x_tbi[t] @ w_ih.T + h @ w_hh.T + b_ih + b_hh
        i = jax.nn.sigmoid(g[:, 0 * H:1 * H])
        f = jax.nn.sigmoid(g[:, 1 * H:2 * H])
        gg = jnp.tanh(g[:, 2 * H:3 * H])
        o = jax.nn.sigmoid(g[:, 3 * H:4 * H])
        c = f * c + i * gg
        h = o * jnp.tanh(c)
        ys[t] = h
    return jnp.stack(ys, axis=0), h, c


def temporal_lstm_ref(x_bti, params, num_layers, hidden_size, bidirectional=True):
    x = jnp.transpose(x_bti, (1, 0, 2)).astype(jnp.float32)
    num_dir = 2 if bidirectional else 1
    h_list, c_list = [], []
    layer_in = x
    for layer in range(num_layers):
        dir_outs = []
        for d in range(num_dir):
            w_ih, w_hh, b_ih, b_hh = params[(layer, d)]
            y, hn, cn = _lstm_dir_ref(layer_in, w_ih, w_hh, b_ih, b_hh, reverse=(d == 1))
            dir_outs.append(y)
            h_list.append(hn)
            c_list.append(cn)
        layer_in = (jnp.concatenate(dir_outs, axis=-1)
                    if num_dir == 2 else dir_outs[0])
    output = jnp.transpose(layer_in, (1, 0, 2))
    return output, (jnp.stack(h_list, 0), jnp.stack(c_list, 0))


# ----------------------------------------------------------------------------
# Deterministic parameter init (mirrors nn.LSTM shapes, uniform(-1/sqrt(H), 1/sqrt(H)))
# ----------------------------------------------------------------------------
def init_lstm_params(key, input_size, hidden_size, num_layers, bidirectional):
    num_dir = 2 if bidirectional else 1
    k = 1.0 / math.sqrt(hidden_size)
    params = {}
    for layer in range(num_layers):
        in_sz = input_size if layer == 0 else hidden_size * num_dir
        for d in range(num_dir):
            key, k1, k2, k3, k4 = jax.random.split(key, 5)
            w_ih = jax.random.uniform(k1, (4 * hidden_size, in_sz), jnp.float32, -k, k)
            w_hh = jax.random.uniform(k2, (4 * hidden_size, hidden_size), jnp.float32, -k, k)
            b_ih = jax.random.uniform(k3, (4 * hidden_size,), jnp.float32, -k, k)
            b_hh = jax.random.uniform(k4, (4 * hidden_size,), jnp.float32, -k, k)
            params[(layer, d)] = (w_ih, w_hh, b_ih, b_hh)
    return params


if __name__ == "__main__":
    B, T, I, H = 2, 8, 16, 32
    NUM_LAYERS = 2
    BIDIR = True

    key = jax.random.PRNGKey(0)
    key, kx = jax.random.split(key)
    x = jax.random.normal(kx, (B, T, I), jnp.float32)
    params = init_lstm_params(key, I, H, NUM_LAYERS, BIDIR)

    out_ref, (h_ref, c_ref) = temporal_lstm_ref(x, params, NUM_LAYERS, H, BIDIR)

    # ---- f32 compute path (tight structural check) ----
    out32, (h32, c32) = temporal_lstm_forward(x, params, NUM_LAYERS, H, BIDIR,
                                              compute_dtype=jnp.float32)
    out32 = jax.block_until_ready(out32)
    assert out32.shape == (B, T, 2 * H)
    assert h32.shape == (NUM_LAYERS * 2, B, H)
    assert c32.shape == (NUM_LAYERS * 2, B, H)
    assert jnp.allclose(out32, out_ref, atol=5e-3), "f32 output mismatch"
    assert jnp.allclose(h32, h_ref, atol=5e-3), "f32 h_n mismatch"
    assert jnp.allclose(c32, c_ref, atol=5e-3), "f32 c_n mismatch"

    # ---- bf16 compute path (production config: bf16 W_hh + bf16 xw stream) ----
    out, (h_n, c_n) = temporal_lstm_forward(x, params, NUM_LAYERS, H, BIDIR,
                                            compute_dtype=jnp.bfloat16)
    out = jax.block_until_ready(out)
    h_n = jax.block_until_ready(h_n)
    c_n = jax.block_until_ready(c_n)
    assert jnp.allclose(out, out_ref, atol=3e-2), "bf16 output mismatch"
    assert jnp.allclose(h_n, h_ref, atol=3e-2), "bf16 h_n mismatch"
    assert jnp.allclose(c_n, c_ref, atol=3e-2), "bf16 c_n mismatch"

    # ---- non-divisible T exercises the padding/mask path (T=11, forced chunk=4) ----
    key, kx2 = jax.random.split(key)
    x2 = jax.random.normal(kx2, (B, 11, I), jnp.float32)
    out2, (h2, c2) = temporal_lstm_forward(x2, params, NUM_LAYERS, H, BIDIR,
                                           compute_dtype=jnp.float32, time_chunk=4)
    out2 = jax.block_until_ready(out2)
    out2_ref, (h2_ref, c2_ref) = temporal_lstm_ref(x2, params, NUM_LAYERS, H, BIDIR)
    assert jnp.allclose(out2, out2_ref, atol=5e-3), "padded-T output mismatch"
    assert jnp.allclose(h2, h2_ref, atol=5e-3), "padded-T h_n mismatch"
    assert jnp.allclose(c2, c2_ref, atol=5e-3), "padded-T c_n mismatch"

    print("KERNEL_OK")
</pallas_src>

<mosaic_0001>
module attributes {stable_mosaic.version = 11 : i64} {
  func.func @lstm_chunk_kernel(%arg0: i32, %arg1: memref<8x2x128xf32, #tpu.memory_space<vmem>>, %arg2: memref<8x2x128xf32, #tpu.memory_space<vmem>>, %arg3: memref<2x32x128xf32, #tpu.memory_space<vmem>>, %arg4: memref<8x2x32xf32, #tpu.memory_space<vmem>>, %arg5: memref<8x2x32xf32, #tpu.memory_space<vmem>>, %arg6: memref<2x2x32xf32, #tpu.memory_space<vmem>>, %arg7: memref<2x2x32xf32, #tpu.memory_space<vmem>>, %arg8: memref<2x2x32xf32, #tpu.memory_space<vmem>>) attributes {dimension_semantics = [#tpu.dimension_semantics<arbitrary>], iteration_bounds = array<i64: 1>, scalar_prefetch = 0 : i64, scratch_operands = 2 : i64, tpu.core_type = #tpu.core_type<tc>, window_params = [{transform_indices = @transform_0, window_bounds = array<i64: 8, 2, 128>}, {transform_indices = @transform_1, window_bounds = array<i64: 8, 2, 128>}, {pipeline_mode = #tpu.pipeline_mode<synchronous>, transform_indices = @transform_2, window_bounds = array<i64: 2, 32, 128>}, {transform_indices = @transform_3, window_bounds = array<i64: 8, 2, 32>}, {transform_indices = @transform_4, window_bounds = array<i64: 8, 2, 32>}, {pipeline_mode = #tpu.pipeline_mode<synchronous>, transform_indices = @transform_5, window_bounds = array<i64: 2, 2, 32>}]} {
    %c0_i32 = arith.constant 0 : i32
    %0 = arith.cmpi eq, %arg0, %c0_i32 : i32
    %1 = arith.extui %0 : i1 to i32
    %c0_i32_0 = arith.constant 0 : i32
    %2 = arith.cmpi ne, %1, %c0_i32_0 : i32
    scf.if %2 {
      %cst_105 = arith.constant 0.000000e+00 : f32
      %331 = vector.broadcast %cst_105 : f32 to vector<2x2x32xf32>
      %c0_106 = arith.constant 0 : index
      %c0_107 = arith.constant 0 : index
      %c0_108 = arith.constant 0 : index
      %332 = vector.load %arg7[%c0_106, %c0_107, %c0_108] : memref<2x2x32xf32, #tpu.memory_space<vmem>>, vector<2x2x32xf32>
      tpu.vector_store %arg7[%c0_106, %c0_107, %c0_108], %331 {strides = array<i32>} : memref<2x2x32xf32, #tpu.memory_space<vmem>>, vector<2x2x32xf32>,
      %cst_109 = arith.constant 0.000000e+00 : f32
      %333 = vector.broadcast %cst_109 : f32 to vector<2x2x32xf32>
      %c0_110 = arith.constant 0 : index
      %c0_111 = arith.constant 0 : index
      %c0_112 = arith.constant 0 : index
      %334 = vector.load %arg8[%c0_110, %c0_111, %c0_112] : memref<2x2x32xf32, #tpu.memory_space<vmem>>, vector<2x2x32xf32>
      tpu.vector_store %arg8[%c0_110, %c0_111, %c0_112], %333 {strides = array<i32>} : memref<2x2x32xf32, #tpu.memory_space<vmem>>, vector<2x2x32xf32>,
    } else {
    }
    %c0 = arith.constant 0 : index
    %c0_1 = arith.constant 0 : index
    %c0_2 = arith.constant 0 : index
    %3 = vector.load %arg3[%c0, %c0_1, %c0_2] : memref<2x32x128xf32, #tpu.memory_space<vmem>>, vector<2x32x128xf32>
    %c0_3 = arith.constant 0 : index
    %c0_4 = arith.constant 0 : index
    %c0_5 = arith.constant 0 : index
    %4 = vector.load %arg7[%c0_3, %c0_4, %c0_5] : memref<2x2x32xf32, #tpu.memory_space<vmem>>, vector<2x2x32xf32>
    %c0_6 = arith.constant 0 : index
    %c0_7 = arith.constant 0 : index
    %c0_8 = arith.constant 0 : index
    %5 = vector.load %arg8[%c0_6, %c0_7, %c0_8] : memref<2x2x32xf32, #tpu.memory_space<vmem>>, vector<2x2x32xf32>
    %c0_i32_9 = arith.constant 0 : i32
    %c7_i32 = arith.constant 7 : i32
    %6 = arith.subi %c7_i32, %c0_i32_9 : i32
    "tpu.trace_start"() <{level = 10 : i32, message = "dbh,dhg->dbg"}> : () -> ()
    %cst = arith.constant dense<0.000000e+00> : vector<2x2x128xf32>
    %7 = tpu.matmul %4, %3, %cst {dimension_numbers = #tpu.dot_dimension_numbers<[2], [1], [1], [2], [0, 0, 0, 1, 1, 2], [0], [0]>} : vector<2x2x32xf32>, vector<2x32x128xf32>, vector<2x2x128xf32> -> vector<2x2x128xf32>
    "tpu.trace_stop"() : () -> ()
    %8 = arith.index_cast %c0_i32_9 : i32 to index
    %c0_10 = arith.constant 0 : index
    %c0_11 = arith.constant 0 : index
    %9 = vector.load %arg1[%8, %c0_10, %c0_11] : memref<8x2x128xf32, #tpu.memory_space<vmem>>, vector<1x2x128xf32>
    %10 = vector.shape_cast %9 : vector<1x2x128xf32> to vector<2x128xf32>
    %11 = arith.index_cast %6 : i32 to index
    %c0_12 = arith.constant 0 : index
    %c0_13 = arith.constant 0 : index
    %12 = vector.load %arg2[%11, %c0_12, %c0_13] : memref<8x2x128xf32, #tpu.memory_space<vmem>>, vector<1x2x128xf32>
    %13 = vector.shape_cast %12 : vector<1x2x128xf32> to vector<2x128xf32>
    %14 = vector.shape_cast %10 : vector<2x128xf32> to vector<1x2x128xf32>
    %15 = vector.shape_cast %13 : vector<2x128xf32> to vector<1x2x128xf32>
    %16 = tpu.concatenate %14, %15 in 0 : vector<1x2x128xf32>, vector<1x2x128xf32> -> vector<2x2x128xf32>
    %17 = arith.addf %7, %16 : vector<2x2x128xf32>
    %18 = vector.extract_strided_slice %17 {offsets = [0, 0, 0], sizes = [2, 2, 96], strides = [1, 1, 1]} : vector<2x2x128xf32> to vector<2x2x96xf32>
    %19 = arith.negf %18 : vector<2x2x96xf32>
    %20 = math.exp %19 : vector<2x2x96xf32>
    %cst_14 = arith.constant 1.000000e+00 : f32
    %21 = vector.broadcast %cst_14 : f32 to vector<2x2x96xf32>
    %22 = arith.addf %21, %20 : vector<2x2x96xf32>
    %23 = arith.divf %21, %22 : vector<2x2x96xf32>
    %24 = vector.extract_strided_slice %17 {offsets = [0, 0, 96], sizes = [2, 2, 32], strides = [1, 1, 1]} : vector<2x2x128xf32> to vector<2x2x32xf32>
    %25 = math.tanh %24 : vector<2x2x32xf32>
    %26 = vector.extract_strided_slice %23 {offsets = [0, 0, 32], sizes = [2, 2, 32], strides = [1, 1, 1]} : vector<2x2x96xf32> to vector<2x2x32xf32>
    %27 = arith.mulf %26, %5 : vector<2x2x32xf32>
    %28 = vector.extract_strided_slice %23 {offsets = [0, 0, 0], sizes = [2, 2, 32], strides = [1, 1, 1]} : vector<2x2x96xf32> to vector<2x2x32xf32>
    %29 = arith.mulf %28, %25 : vector<2x2x32xf32>
    %30 = arith.addf %27, %29 : vector<2x2x32xf32>
    %31 = vector.extract_strided_slice %23 {offsets = [0, 0, 64], sizes = [2, 2, 32], strides = [1, 1, 1]} : vector<2x2x96xf32> to vector<2x2x32xf32>
    %32 = math.tanh %30 : vector<2x2x32xf32>
    %33 = arith.mulf %31, %32 : vector<2x2x32xf32>
    %34 = vector.extract_strided_slice %33 {offsets = [0, 0, 0], sizes = [1, 2, 32], strides = [1, 1, 1]} : vector<2x2x32xf32> to vector<1x2x32xf32>
    %35 = vector.shape_cast %34 : vector<1x2x32xf32> to vector<2x32xf32>
    %36 = arith.index_cast %c0_i32_9 : i32 to index
    %c0_15 = arith.constant 0 : index
    %c0_16 = arith.constant 0 : index
    %37 = vector.load %arg4[%36, %c0_15, %c0_16] : memref<8x2x32xf32, #tpu.memory_space<vmem>>, vector<1x2x32xf32>
    %38 = vector.shape_cast %37 : vector<1x2x32xf32> to vector<2x32xf32>
    %39 = vector.shape_cast %35 : vector<2x32xf32> to vector<1x2x32xf32>
    tpu.vector_store %arg4[%36, %c0_15, %c0_16], %39 {strides = array<i32>} : memref<8x2x32xf32, #tpu.memory_space<vmem>>, vector<1x2x32xf32>,
    %40 = vector.extract_strided_slice %33 {offsets = [1, 0, 0], sizes = [1, 2, 32], strides = [1, 1, 1]} : vector<2x2x32xf32> to vector<1x2x32xf32>
    %41 = vector.shape_cast %40 : vector<1x2x32xf32> to vector<2x32xf32>
    %42 = arith.index_cast %6 : i32 to index
    %c0_17 = arith.constant 0 : index
    %c0_18 = arith.constant 0 : index
    %43 = vector.load %arg5[%42, %c0_17, %c0_18] : memref<8x2x32xf32, #tpu.memory_space<vmem>>, vector<1x2x32xf32>
    %44 = vector.shape_cast %43 : vector<1x2x32xf32> to vector<2x32xf32>
    %45 = vector.shape_cast %41 : vector<2x32xf32> to vector<1x2x32xf32>
    tpu.vector_store %arg5[%42, %c0_17, %c0_18], %45 {strides = array<i32>} : memref<8x2x32xf32, #tpu.memory_space<vmem>>, vector<1x2x32xf32>,
    %c1_i32 = arith.constant 1 : i32
    %c7_i32_19 = arith.constant 7 : i32
    %46 = arith.subi %c7_i32_19, %c1_i32 : i32
    "tpu.trace_start"() <{level = 10 : i32, message = "dbh,dhg->dbg"}> : () -> ()
    %cst_20 = arith.constant dense<0.000000e+00> : vector<2x2x128xf32>
    %47 = tpu.matmul %33, %3, %cst_20 {dimension_numbers = #tpu.dot_dimension_numbers<[2], [1], [1], [2], [0, 0, 0, 1, 1, 2], [0], [0]>} : vector<2x2x32xf32>, vector<2x32x128xf32>, vector<2x2x128xf32> -> vector<2x2x128xf32>
    "tpu.trace_stop"() : () -> ()
    %48 = arith.index_cast %c1_i32 : i32 to index
    %c0_21 = arith.constant 0 : index
    %c0_22 = arith.constant 0 : index
    %49 = vector.load %arg1[%48, %c0_21, %c0_22] : memref<8x2x128xf32, #tpu.memory_space<vmem>>, vector<1x2x128xf32>
    %50 = vector.shape_cast %49 : vector<1x2x128xf32> to vector<2x128xf32>
    %51 = arith.index_cast %46 : i32 to index
    %c0_23 = arith.constant 0 : index
    %c0_24 = arith.constant 0 : index
    %52 = vector.load %arg2[%51, %c0_23, %c0_24] : memref<8x2x128xf32, #tpu.memory_space<vmem>>, vector<1x2x128xf32>
    %53 = vector.shape_cast %52 : vector<1x2x128xf32> to vector<2x128xf32>
    %54 = vector.shape_cast %50 : vector<2x128xf32> to vector<1x2x128xf32>
    %55 = vector.shape_cast %53 : vector<2x128xf32> to vector<1x2x128xf32>
    %56 = tpu.concatenate %54, %55 in 0 : vector<1x2x128xf32>, vector<1x2x128xf32> -> vector<2x2x128xf32>
    %57 = arith.addf %47, %56 : vector<2x2x128xf32>
    %58 = vector.extract_strided_slice %57 {offsets = [0, 0, 0], sizes = [2, 2, 96], strides = [1, 1, 1]} : vector<2x2x128xf32> to vector<2x2x96xf32>
    %59 = arith.negf %58 : vector<2x2x96xf32>
    %60 = math.exp %59 : vector<2x2x96xf32>
    %cst_25 = arith.constant 1.000000e+00 : f32
    %61 = vector.broadcast %cst_25 : f32 to vector<2x2x96xf32>
    %62 = arith.addf %61, %60 : vector<2x2x96xf32>
    %63 = arith.divf %61, %62 : vector<2x2x96xf32>
    %64 = vector.extract_strided_slice %57 {offsets = [0, 0, 96], sizes = [2, 2, 32], strides = [1, 1, 1]} : vector<2x2x128xf32> to vector<2x2x32xf32>
    %65 = math.tanh %64 : vector<2x2x32xf32>
    %66 = vector.extract_strided_slice %63 {offsets = [0, 0, 32], sizes = [2, 2, 32], strides = [1, 1, 1]} : vector<2x2x96xf32> to vector<2x2x32xf32>
    %67 = arith.mulf %66, %30 : vector<2x2x32xf32>
    %68 = vector.extract_strided_slice %63 {offsets = [0, 0, 0], sizes = [2, 2, 32], strides = [1, 1, 1]} : vector<2x2x96xf32> to vector<2x2x32xf32>
    %69 = arith.mulf %68, %65 : vector<2x2x32xf32>
    %70 = arith.addf %67, %69 : vector<2x2x32xf32>
    %71 = vector.extract_strided_slice %63 {offsets = [0, 0, 64], sizes = [2, 2, 32], strides = [1, 1, 1]} : vector<2x2x96xf32> to vector<2x2x32xf32>
    %72 = math.tanh %70 : vector<2x2x32xf32>
    %73 = arith.mulf %71, %72 : vector<2x2x32xf32>
    %74 = vector.extract_strided_slice %73 {offsets = [0, 0, 0], sizes = [1, 2, 32], strides = [1, 1, 1]} : vector<2x2x32xf32> to vector<1x2x32xf32>
    %75 = vector.shape_cast %74 : vector<1x2x32xf32> to vector<2x32xf32>
    %76 = arith.index_cast %c1_i32 : i32 to index
    %c0_26 = arith.constant 0 : index
    %c0_27 = arith.constant 0 : index
    %77 = vector.load %arg4[%76, %c0_26, %c0_27] : memref<8x2x32xf32, #tpu.memory_space<vmem>>, vector<1x2x32xf32>
    %78 = vector.shape_cast %77 : vector<1x2x32xf32> to vector<2x32xf32>
    %79 = vector.shape_cast %75 : vector<2x32xf32> to vector<1x2x32xf32>
    tpu.vector_store %arg4[%76, %c0_26, %c0_27], %79 {strides = array<i32>} : memref<8x2x32xf32, #tpu.memory_space<vmem>>, vector<1x2x32xf32>,
    %80 = vector.extract_strided_slice %73 {offsets = [1, 0, 0], sizes = [1, 2, 32], strides = [1, 1, 1]} : vector<2x2x32xf32> to vector<1x2x32xf32>
    %81 = vector.shape_cast %80 : vector<1x2x32xf32> to vector<2x32xf32>
    %82 = arith.index_cast %46 : i32 to index
    %c0_28 = arith.constant 0 : index
    %c0_29 = arith.constant 0 : index
    %83 = vector.load %arg5[%82, %c0_28, %c0_29] : memref<8x2x32xf32, #tpu.memory_space<vmem>>, vector<1x2x32xf32>
    %84 = vector.shape_cast %83 : vector<1x2x32xf32> to vector<2x32xf32>
    %85 = vector.shape_cast %81 : vector<2x32xf32> to vector<1x2x32xf32>
    tpu.vector_store %arg5[%82, %c0_28, %c0_29], %85 {strides = array<i32>} : memref<8x2x32xf32, #tpu.memory_space<vmem>>, vector<1x2x32xf32>,
    %c2_i32 = arith.constant 2 : i32
    %c7_i32_30 = arith.constant 7 : i32
    %86 = arith.subi %c7_i32_30, %c2_i32 : i32
    "tpu.trace_start"() <{level = 10 : i32, message = "dbh,dhg->dbg"}> : () -> ()
    %cst_31 = arith.constant dense<0.000000e+00> : vector<2x2x128xf32>
    %87 = tpu.matmul %73, %3, %cst_31 {dimension_numbers = #tpu.dot_dimension_numbers<[2], [1], [1], [2], [0, 0, 0, 1, 1, 2], [0], [0]>} : vector<2x2x32xf32>, vector<2x32x128xf32>, vector<2x2x128xf32> -> vector<2x2x128xf32>
    "tpu.trace_stop"() : () -> ()
    %88 = arith.index_cast %c2_i32 : i32 to index
    %c0_32 = arith.constant 0 : index
    %c0_33 = arith.constant 0 : index
    %89 = vector.load %arg1[%88, %c0_32, %c0_33] : memref<8x2x128xf32, #tpu.memory_space<vmem>>, vector<1x2x128xf32>
    %90 = vector.shape_cast %89 : vector<1x2x128xf32> to vector<2x128xf32>
    %91 = arith.index_cast %86 : i32 to index
    %c0_34 = arith.constant 0 : index
    %c0_35 = arith.constant 0 : index
    %92 = vector.load %arg2[%91, %c0_34, %c0_35] : memref<8x2x128xf32, #tpu.memory_space<vmem>>, vector<1x2x128xf32>
    %93 = vector.shape_cast %92 : vector<1x2x128xf32> to vector<2x128xf32>
    %94 = vector.shape_cast %90 : vector<2x128xf32> to vector<1x2x128xf32>
    %95 = vector.shape_cast %93 : vector<2x128xf32> to vector<1x2x128xf32>
    %96 = tpu.concatenate %94, %95 in 0 : vector<1x2x128xf32>, vector<1x2x128xf32> -> vector<2x2x128xf32>
    %97 = arith.addf %87, %96 : vector<2x2x128xf32>
    %98 = vector.extract_strided_slice %97 {offsets = [0, 0, 0], sizes = [2, 2, 96], strides = [1, 1, 1]} : vector<2x2x128xf32> to vector<2x2x96xf32>
    %99 = arith.negf %98 : vector<2x2x96xf32>
    %100 = math.exp %99 : vector<2x2x96xf32>
    %cst_36 = arith.constant 1.000000e+00 : f32
    %101 = vector.broadcast %cst_36 : f32 to vector<2x2x96xf32>
    %102 = arith.addf %101, %100 : vector<2x2x96xf32>
    %103 = arith.divf %101, %102 : vector<2x2x96xf32>
    %104 = vector.extract_strided_slice %97 {offsets = [0, 0, 96], sizes = [2, 2, 32], strides = [1, 1, 1]} : vector<2x2x128xf32> to vector<2x2x32xf32>
    %105 = math.tanh %104 : vector<2x2x32xf32>
    %106 = vector.extract_strided_slice %103 {offsets = [0, 0, 32], sizes = [2, 2, 32], strides = [1, 1, 1]} : vector<2x2x96xf32> to vector<2x2x32xf32>
    %107 = arith.mulf %106, %70 : vector<2x2x32xf32>
    %108 = vector.extract_strided_slice %103 {offsets = [0, 0, 0], sizes = [2, 2, 32], strides = [1, 1, 1]} : vector<2x2x96xf32> to vector<2x2x32xf32>
    %109 = arith.mulf %108, %105 : vector<2x2x32xf32>
    %110 = arith.addf %107, %109 : vector<2x2x32xf32>
    %111 = vector.extract_strided_slice %103 {offsets = [0, 0, 64], sizes = [2, 2, 32], strides = [1, 1, 1]} : vector<2x2x96xf32> to vector<2x2x32xf32>
    %112 = math.tanh %110 : vector<2x2x32xf32>
    %113 = arith.mulf %111, %112 : vector<2x2x32xf32>
    %114 = vector.extract_strided_slice %113 {offsets = [0, 0, 0], sizes = [1, 2, 32], strides = [1, 1, 1]} : vector<2x2x32xf32> to vector<1x2x32xf32>
    %115 = vector.shape_cast %114 : vector<1x2x32xf32> to vector<2x32xf32>
    %116 = arith.index_cast %c2_i32 : i32 to index
    %c0_37 = arith.constant 0 : index
    %c0_38 = arith.constant 0 : index
    %117 = vector.load %arg4[%116, %c0_37, %c0_38] : memref<8x2x32xf32, #tpu.memory_space<vmem>>, vector<1x2x32xf32>
    %118 = vector.shape_cast %117 : vector<1x2x32xf32> to vector<2x32xf32>
    %119 = vector.shape_cast %115 : vector<2x32xf32> to vector<1x2x32xf32>
    tpu.vector_store %arg4[%116, %c0_37, %c0_38], %119 {strides = array<i32>} : memref<8x2x32xf32, #tpu.memory_space<vmem>>, vector<1x2x32xf32>,
    %120 = vector.extract_strided_slice %113 {offsets = [1, 0, 0], sizes = [1, 2, 32], strides = [1, 1, 1]} : vector<2x2x32xf32> to vector<1x2x32xf32>
    %121 = vector.shape_cast %120 : vector<1x2x32xf32> to vector<2x32xf32>
    %122 = arith.index_cast %86 : i32 to index
    %c0_39 = arith.constant 0 : index
    %c0_40 = arith.constant 0 : index
    %123 = vector.load %arg5[%122, %c0_39, %c0_40] : memref<8x2x32xf32, #tpu.memory_space<vmem>>, vector<1x2x32xf32>
    %124 = vector.shape_cast %123 : vector<1x2x32xf32> to vector<2x32xf32>
    %125 = vector.shape_cast %121 : vector<2x32xf32> to vector<1x2x32xf32>
    tpu.vector_store %arg5[%122, %c0_39, %c0_40], %125 {strides = array<i32>} : memref<8x2x32xf32, #tpu.memory_space<vmem>>, vector<1x2x32xf32>,
    %c3_i32 = arith.constant 3 : i32
    %c7_i32_41 = arith.constant 7 : i32
    %126 = arith.subi %c7_i32_41, %c3_i32 : i32
    "tpu.trace_start"() <{level = 10 : i32, message = "dbh,dhg->dbg"}> : () -> ()
    %cst_42 = arith.constant dense<0.000000e+00> : vector<2x2x128xf32>
    %127 = tpu.matmul %113, %3, %cst_42 {dimension_numbers = #tpu.dot_dimension_numbers<[2], [1], [1], [2], [0, 0, 0, 1, 1, 2], [0], [0]>} : vector<2x2x32xf32>, vector<2x32x128xf32>, vector<2x2x128xf32> -> vector<2x2x128xf32>
    "tpu.trace_stop"() : () -> ()
    %128 = arith.index_cast %c3_i32 : i32 to index
    %c0_43 = arith.constant 0 : index
    %c0_44 = arith.constant 0 : index
    %129 = vector.load %arg1[%128, %c0_43, %c0_44] : memref<8x2x128xf32, #tpu.memory_space<vmem>>, vector<1x2x128xf32>
    %130 = vector.shape_cast %129 : vector<1x2x128xf32> to vector<2x128xf32>
    %131 = arith.index_cast %126 : i32 to index
    %c0_45 = arith.constant 0 : index
    %c0_46 = arith.constant 0 : index
    %132 = vector.load %arg2[%131, %c0_45, %c0_46] : memref<8x2x128xf32, #tpu.memory_space<vmem>>, vector<1x2x128xf32>
    %133 = vector.shape_cast %132 : vector<1x2x128xf32> to vector<2x128xf32>
    %134 = vector.shape_cast %130 : vector<2x128xf32> to vector<1x2x128xf32>
    %135 = vector.shape_cast %133 : vector<2x128xf32> to vector<1x2x128xf32>
    %136 = tpu.concatenate %134, %135 in 0 : vector<1x2x128xf32>, vector<1x2x128xf32> -> vector<2x2x128xf32>
    %137 = arith.addf %127, %136 : vector<2x2x128xf32>
    %138 = vector.extract_strided_slice %137 {offsets = [0, 0, 0], sizes = [2, 2, 96], strides = [1, 1, 1]} : vector<2x2x128xf32> to vector<2x2x96xf32>
    %139 = arith.negf %138 : vector<2x2x96xf32>
    %140 = math.exp %139 : vector<2x2x96xf32>
    %cst_47 = arith.constant 1.000000e+00 : f32
    %141 = vector.broadcast %cst_47 : f32 to vector<2x2x96xf32>
    %142 = arith.addf %141, %140 : vector<2x2x96xf32>
    %143 = arith.divf %141, %142 : vector<2x2x96xf32>
    %144 = vector.extract_strided_slice %137 {offsets = [0, 0, 96], sizes = [2, 2, 32], strides = [1, 1, 1]} : vector<2x2x128xf32> to vector<2x2x32xf32>
    %145 = math.tanh %144 : vector<2x2x32xf32>
    %146 = vector.extract_strided_slice %143 {offsets = [0, 0, 32], sizes = [2, 2, 32], strides = [1, 1, 1]} : vector<2x2x96xf32> to vector<2x2x32xf32>
    %147 = arith.mulf %146, %110 : vector<2x2x32xf32>
    %148 = vector.extract_strided_slice %143 {offsets = [0, 0, 0], sizes = [2, 2, 32], strides = [1, 1, 1]} : vector<2x2x96xf32> to vector<2x2x32xf32>
    %149 = arith.mulf %148, %145 : vector<2x2x32xf32>
    %150 = arith.addf %147, %149 : vector<2x2x32xf32>
    %151 = vector.extract_strided_slice %143 {offsets = [0, 0, 64], sizes = [2, 2, 32], strides = [1, 1, 1]} : vector<2x2x96xf32> to vector<2x2x32xf32>
    %152 = math.tanh %150 : vector<2x2x32xf32>
    %153 = arith.mulf %151, %152 : vector<2x2x32xf32>
    %154 = vector.extract_strided_slice %153 {offsets = [0, 0, 0], sizes = [1, 2, 32], strides = [1, 1, 1]} : vector<2x2x32xf32> to vector<1x2x32xf32>
    %155 = vector.shape_cast %154 : vector<1x2x32xf32> to vector<2x32xf32>
    %156 = arith.index_cast %c3_i32 : i32 to index
    %c0_48 = arith.constant 0 : index
    %c0_49 = arith.constant 0 : index
    %157 = vector.load %arg4[%156, %c0_48, %c0_49] : memref<8x2x32xf32, #tpu.memory_space<vmem>>, vector<1x2x32xf32>
    %158 = vector.shape_cast %157 : vector<1x2x32xf32> to vector<2x32xf32>
    %159 = vector.shape_cast %155 : vector<2x32xf32> to vector<1x2x32xf32>
    tpu.vector_store %arg4[%156, %c0_48, %c0_49], %159 {strides = array<i32>} : memref<8x2x32xf32, #tpu.memory_space<vmem>>, vector<1x2x32xf32>,
    %160 = vector.extract_strided_slice %153 {offsets = [1, 0, 0], sizes = [1, 2, 32], strides = [1, 1, 1]} : vector<2x2x32xf32> to vector<1x2x32xf32>
    %161 = vector.shape_cast %160 : vector<1x2x32xf32> to vector<2x32xf32>
    %162 = arith.index_cast %126 : i32 to index
    %c0_50 = arith.constant 0 : index
    %c0_51 = arith.constant 0 : index
    %163 = vector.load %arg5[%162, %c0_50, %c0_51] : memref<8x2x32xf32, #tpu.memory_space<vmem>>, vector<1x2x32xf32>
    %164 = vector.shape_cast %163 : vector<1x2x32xf32> to vector<2x32xf32>
    %165 = vector.shape_cast %161 : vector<2x32xf32> to vector<1x2x32xf32>
    tpu.vector_store %arg5[%162, %c0_50, %c0_51], %165 {strides = array<i32>} : memref<8x2x32xf32, #tpu.memory_space<vmem>>, vector<1x2x32xf32>,
    %c4_i32 = arith.constant 4 : i32
    %c7_i32_52 = arith.constant 7 : i32
    %166 = arith.subi %c7_i32_52, %c4_i32 : i32
    "tpu.trace_start"() <{level = 10 : i32, message = "dbh,dhg->dbg"}> : () -> ()
    %cst_53 = arith.constant dense<0.000000e+00> : vector<2x2x128xf32>
    %167 = tpu.matmul %153, %3, %cst_53 {dimension_numbers = #tpu.dot_dimension_numbers<[2], [1], [1], [2], [0, 0, 0, 1, 1, 2], [0], [0]>} : vector<2x2x32xf32>, vector<2x32x128xf32>, vector<2x2x128xf32> -> vector<2x2x128xf32>
    "tpu.trace_stop"() : () -> ()
    %168 = arith.index_cast %c4_i32 : i32 to index
    %c0_54 = arith.constant 0 : index
    %c0_55 = arith.constant 0 : index
    %169 = vector.load %arg1[%168, %c0_54, %c0_55] : memref<8x2x128xf32, #tpu.memory_space<vmem>>, vector<1x2x128xf32>
    %170 = vector.shape_cast %169 : vector<1x2x128xf32> to vector<2x128xf32>
    %171 = arith.index_cast %166 : i32 to index
    %c0_56 = arith.constant 0 : index
    %c0_57 = arith.constant 0 : index
    %172 = vector.load %arg2[%171, %c0_56, %c0_57] : memref<8x2x128xf32, #tpu.memory_space<vmem>>, vector<1x2x128xf32>
    %173 = vector.shape_cast %172 : vector<1x2x128xf32> to vector<2x128xf32>
    %174 = vector.shape_cast %170 : vector<2x128xf32> to vector<1x2x128xf32>
    %175 = vector.shape_cast %173 : vector<2x128xf32> to vector<1x2x128xf32>
    %176 = tpu.concatenate %174, %175 in 0 : vector<1x2x128xf32>, vector<1x2x128xf32> -> vector<2x2x128xf32>
    %177 = arith.addf %167, %176 : vector<2x2x128xf32>
    %178 = vector.extract_strided_slice %177 {offsets = [0, 0, 0], sizes = [2, 2, 96], strides = [1, 1, 1]} : vector<2x2x128xf32> to vector<2x2x96xf32>
    %179 = arith.negf %178 : vector<2x2x96xf32>
    %180 = math.exp %179 : vector<2x2x96xf32>
    %cst_58 = arith.constant 1.000000e+00 : f32
    %181 = vector.broadcast %cst_58 : f32 to vector<2x2x96xf32>
    %182 = arith.addf %181, %180 : vector<2x2x96xf32>
    %183 = arith.divf %181, %182 : vector<2x2x96xf32>
    %184 = vector.extract_strided_slice %177 {offsets = [0, 0, 96], sizes = [2, 2, 32], strides = [1, 1, 1]} : vector<2x2x128xf32> to vector<2x2x32xf32>
    %185 = math.tanh %184 : vector<2x2x32xf32>
    %186 = vector.extract_strided_slice %183 {offsets = [0, 0, 32], sizes = [2, 2, 32], strides = [1, 1, 1]} : vector<2x2x96xf32> to vector<2x2x32xf32>
    %187 = arith.mulf %186, %150 : vector<2x2x32xf32>
    %188 = vector.extract_strided_slice %183 {offsets = [0, 0, 0], sizes = [2, 2, 32], strides = [1, 1, 1]} : vector<2x2x96xf32> to vector<2x2x32xf32>
    %189 = arith.mulf %188, %185 : vector<2x2x32xf32>
    %190 = arith.addf %187, %189 : vector<2x2x32xf32>
    %191 = vector.extract_strided_slice %183 {offsets = [0, 0, 64], sizes = [2, 2, 32], strides = [1, 1, 1]} : vector<2x2x96xf32> to vector<2x2x32xf32>
    %192 = math.tanh %190 : vector<2x2x32xf32>
    %193 = arith.mulf %191, %192 : vector<2x2x32xf32>
    %194 = vector.extract_strided_slice %193 {offsets = [0, 0, 0], sizes = [1, 2, 32], strides = [1, 1, 1]} : vector<2x2x32xf32> to vector<1x2x32xf32>
    %195 = vector.shape_cast %194 : vector<1x2x32xf32> to vector<2x32xf32>
    %196 = arith.index_cast %c4_i32 : i32 to index
    %c0_59 = arith.constant 0 : index
    %c0_60 = arith.constant 0 : index
    %197 = vector.load %arg4[%196, %c0_59, %c0_60] : memref<8x2x32xf32, #tpu.memory_space<vmem>>, vector<1x2x32xf32>
    %198 = vector.shape_cast %197 : vector<1x2x32xf32> to vector<2x32xf32>
    %199 = vector.shape_cast %195 : vector<2x32xf32> to vector<1x2x32xf32>
    tpu.vector_store %arg4[%196, %c0_59, %c0_60], %199 {strides = array<i32>} : memref<8x2x32xf32, #tpu.memory_space<vmem>>, vector<1x2x32xf32>,
    %200 = vector.extract_strided_slice %193 {offsets = [1, 0, 0], sizes = [1, 2, 32], strides = [1, 1, 1]} : vector<2x2x32xf32> to vector<1x2x32xf32>
    %201 = vector.shape_cast %200 : vector<1x2x32xf32> to vector<2x32xf32>
    %202 = arith.index_cast %166 : i32 to index
    %c0_61 = arith.constant 0 : index
    %c0_62 = arith.constant 0 : index
    %203 = vector.load %arg5[%202, %c0_61, %c0_62] : memref<8x2x32xf32, #tpu.memory_space<vmem>>, vector<1x2x32xf32>
    %204 = vector.shape_cast %203 : vector<1x2x32xf32> to vector<2x32xf32>
    %205 = vector.shape_cast %201 : vector<2x32xf32> to vector<1x2x32xf32>
    tpu.vector_store %arg5[%202, %c0_61, %c0_62], %205 {strides = array<i32>} : memref<8x2x32xf32, #tpu.memory_space<vmem>>, vector<1x2x32xf32>,
    %c5_i32 = arith.constant 5 : i32
    %c7_i32_63 = arith.constant 7 : i32
    %206 = arith.subi %c7_i32_63, %c5_i32 : i32
    "tpu.trace_start"() <{level = 10 : i32, message = "dbh,dhg->dbg"}> : () -> ()
    %cst_64 = arith.constant dense<0.000000e+00> : vector<2x2x128xf32>
    %207 = tpu.matmul %193, %3, %cst_64 {dimension_numbers = #tpu.dot_dimension_numbers<[2], [1], [1], [2], [0, 0, 0, 1, 1, 2], [0], [0]>} : vector<2x2x32xf32>, vector<2x32x128xf32>, vector<2x2x128xf32> -> vector<2x2x128xf32>
    "tpu.trace_stop"() : () -> ()
    %208 = arith.index_cast %c5_i32 : i32 to index
    %c0_65 = arith.constant 0 : index
    %c0_66 = arith.constant 0 : index
    %209 = vector.load %arg1[%208, %c0_65, %c0_66] : memref<8x2x128xf32, #tpu.memory_space<vmem>>, vector<1x2x128xf32>
    %210 = vector.shape_cast %209 : vector<1x2x128xf32> to vector<2x128xf32>
    %211 = arith.index_cast %206 : i32 to index
    %c0_67 = arith.constant 0 : index
    %c0_68 = arith.constant 0 : index
    %212 = vector.load %arg2[%211, %c0_67, %c0_68] : memref<8x2x128xf32, #tpu.memory_space<vmem>>, vector<1x2x128xf32>
    %213 = vector.shape_cast %212 : vector<1x2x128xf32> to vector<2x128xf32>
    %214 = vector.shape_cast %210 : vector<2x128xf32> to vector<1x2x128xf32>
    %215 = vector.shape_cast %213 : vector<2x128xf32> to vector<1x2x128xf32>
    %216 = tpu.concatenate %214, %215 in 0 : vector<1x2x128xf32>, vector<1x2x128xf32> -> vector<2x2x128xf32>
    %217 = arith.addf %207, %216 : vector<2x2x128xf32>
    %218 = vector.extract_strided_slice %217 {offsets = [0, 0, 0], sizes = [2, 2, 96], strides = [1, 1, 1]} : vector<2x2x128xf32> to vector<2x2x96xf32>
    %219 = arith.negf %218 : vector<2x2x96xf32>
    %220 = math.exp %219 : vector<2x2x96xf32>
    %cst_69 = arith.constant 1.000000e+00 : f32
    %221 = vector.broadcast %cst_69 : f32 to vector<2x2x96xf32>
    %222 = arith.addf %221, %220 : vector<2x2x96xf32>
    %223 = arith.divf %221, %222 : vector<2x2x96xf32>
    %224 = vector.extract_strided_slice %217 {offsets = [0, 0, 96], sizes = [2, 2, 32], strides = [1, 1, 1]} : vector<2x2x128xf32> to vector<2x2x32xf32>
    %225 = math.tanh %224 : vector<2x2x32xf32>
    %226 = vector.extract_strided_slice %223 {offsets = [0, 0, 32], sizes = [2, 2, 32], strides = [1, 1, 1]} : vector<2x2x96xf32> to vector<2x2x32xf32>
    %227 = arith.mulf %226, %190 : vector<2x2x32xf32>
    %228 = vector.extract_strided_slice %223 {offsets = [0, 0, 0], sizes = [2, 2, 32], strides = [1, 1, 1]} : vector<2x2x96xf32> to vector<2x2x32xf32>
    %229 = arith.mulf %228, %225 : vector<2x2x32xf32>
    %230 = arith.addf %227, %229 : vector<2x2x32xf32>
    %231 = vector.extract_strided_slice %223 {offsets = [0, 0, 64], sizes = [2, 2, 32], strides = [1, 1, 1]} : vector<2x2x96xf32> to vector<2x2x32xf32>
    %232 = math.tanh %230 : vector<2x2x32xf32>
    %233 = arith.mulf %231, %232 : vector<2x2x32xf32>
    %234 = vector.extract_strided_slice %233 {offsets = [0, 0, 0], sizes = [1, 2, 32], strides = [1, 1, 1]} : vector<2x2x32xf32> to vector<1x2x32xf32>
    %235 = vector.shape_cast %234 : vector<1x2x32xf32> to vector<2x32xf32>
    %236 = arith.index_cast %c5_i32 : i32 to index
    %c0_70 = arith.constant 0 : index
    %c0_71 = arith.constant 0 : index
    %237 = vector.load %arg4[%236, %c0_70, %c0_71] : memref<8x2x32xf32, #tpu.memory_space<vmem>>, vector<1x2x32xf32>
    %238 = vector.shape_cast %237 : vector<1x2x32xf32> to vector<2x32xf32>
    %239 = vector.shape_cast %235 : vector<2x32xf32> to vector<1x2x32xf32>
    tpu.vector_store %arg4[%236, %c0_70, %c0_71], %239 {strides = array<i32>} : memref<8x2x32xf32, #tpu.memory_space<vmem>>, vector<1x2x32xf32>,
    %240 = vector.extract_strided_slice %233 {offsets = [1, 0, 0], sizes = [1, 2, 32], strides = [1, 1, 1]} : vector<2x2x32xf32> to vector<1x2x32xf32>
    %241 = vector.shape_cast %240 : vector<1x2x32xf32> to vector<2x32xf32>
    %242 = arith.index_cast %206 : i32 to index
    %c0_72 = arith.constant 0 : index
    %c0_73 = arith.constant 0 : index
    %243 = vector.load %arg5[%242, %c0_72, %c0_73] : memref<8x2x32xf32, #tpu.memory_space<vmem>>, vector<1x2x32xf32>
    %244 = vector.shape_cast %243 : vector<1x2x32xf32> to vector<2x32xf32>
    %245 = vector.shape_cast %241 : vector<2x32xf32> to vector<1x2x32xf32>
    tpu.vector_store %arg5[%242, %c0_72, %c0_73], %245 {strides = array<i32>} : memref<8x2x32xf32, #tpu.memory_space<vmem>>, vector<1x2x32xf32>,
    %c6_i32 = arith.constant 6 : i32
    %c7_i32_74 = arith.constant 7 : i32
    %246 = arith.subi %c7_i32_74, %c6_i32 : i32
    "tpu.trace_start"() <{level = 10 : i32, message = "dbh,dhg->dbg"}> : () -> ()
    %cst_75 = arith.constant dense<0.000000e+00> : vector<2x2x128xf32>
    %247 = tpu.matmul %233, %3, %cst_75 {dimension_numbers = #tpu.dot_dimension_numbers<[2], [1], [1], [2], [0, 0, 0, 1, 1, 2], [0], [0]>} : vector<2x2x32xf32>, vector<2x32x128xf32>, vector<2x2x128xf32> -> vector<2x2x128xf32>
    "tpu.trace_stop"() : () -> ()
    %248 = arith.index_cast %c6_i32 : i32 to index
    %c0_76 = arith.constant 0 : index
    %c0_77 = arith.constant 0 : index
    %249 = vector.load %arg1[%248, %c0_76, %c0_77] : memref<8x2x128xf32, #tpu.memory_space<vmem>>, vector<1x2x128xf32>
    %250 = vector.shape_cast %249 : vector<1x2x128xf32> to vector<2x128xf32>
    %251 = arith.index_cast %246 : i32 to index
    %c0_78 = arith.constant 0 : index
    %c0_79 = arith.constant 0 : index
    %252 = vector.load %arg2[%251, %c0_78, %c0_79] : memref<8x2x128xf32, #tpu.memory_space<vmem>>, vector<1x2x128xf32>
    %253 = vector.shape_cast %252 : vector<1x2x128xf32> to vector<2x128xf32>
    %254 = vector.shape_cast %250 : vector<2x128xf32> to vector<1x2x128xf32>
    %255 = vector.shape_cast %253 : vector<2x128xf32> to vector<1x2x128xf32>
    %256 = tpu.concatenate %254, %255 in 0 : vector<1x2x128xf32>, vector<1x2x128xf32> -> vector<2x2x128xf32>
    %257 = arith.addf %247, %256 : vector<2x2x128xf32>
    %258 = vector.extract_strided_slice %257 {offsets = [0, 0, 0], sizes = [2, 2, 96], strides = [1, 1, 1]} : vector<2x2x128xf32> to vector<2x2x96xf32>
    %259 = arith.negf %258 : vector<2x2x96xf32>
    %260 = math.exp %259 : vector<2x2x96xf32>
    %cst_80 = arith.constant 1.000000e+00 : f32
    %261 = vector.broadcast %cst_80 : f32 to vector<2x2x96xf32>
    %262 = arith.addf %261, %260 : vector<2x2x96xf32>
    %263 = arith.divf %261, %262 : vector<2x2x96xf32>
    %264 = vector.extract_strided_slice %257 {offsets = [0, 0, 96], sizes = [2, 2, 32], strides = [1, 1, 1]} : vector<2x2x128xf32> to vector<2x2x32xf32>
    %265 = math.tanh %264 : vector<2x2x32xf32>
    %266 = vector.extract_strided_slice %263 {offsets = [0, 0, 32], sizes = [2, 2, 32], strides = [1, 1, 1]} : vector<2x2x96xf32> to vector<2x2x32xf32>
    %267 = arith.mulf %266, %230 : vector<2x2x32xf32>
    %268 = vector.extract_strided_slice %263 {offsets = [0, 0, 0], sizes = [2, 2, 32], strides = [1, 1, 1]} : vector<2x2x96xf32> to vector<2x2x32xf32>
    %269 = arith.mulf %268, %265 : vector<2x2x32xf32>
    %270 = arith.addf %267, %269 : vector<2x2x32xf32>
    %271 = vector.extract_strided_slice %263 {offsets = [0, 0, 64], sizes = [2, 2, 32], strides = [1, 1, 1]} : vector<2x2x96xf32> to vector<2x2x32xf32>
    %272 = math.tanh %270 : vector<2x2x32xf32>
    %273 = arith.mulf %271, %272 : vector<2x2x32xf32>
    %274 = vector.extract_strided_slice %273 {offsets = [0, 0, 0], sizes = [1, 2, 32], strides = [1, 1, 1]} : vector<2x2x32xf32> to vector<1x2x32xf32>
    %275 = vector.shape_cast %274 : vector<1x2x32xf32> to vector<2x32xf32>
    %276 = arith.index_cast %c6_i32 : i32 to index
    %c0_81 = arith.constant 0 : index
    %c0_82 = arith.constant 0 : index
    %277 = vector.load %arg4[%276, %c0_81, %c0_82] : memref<8x2x32xf32, #tpu.memory_space<vmem>>, vector<1x2x32xf32>
    %278 = vector.shape_cast %277 : vector<1x2x32xf32> to vector<2x32xf32>
    %279 = vector.shape_cast %275 : vector<2x32xf32> to vector<1x2x32xf32>
    tpu.vector_store %arg4[%276, %c0_81, %c0_82], %279 {strides = array<i32>} : memref<8x2x32xf32, #tpu.memory_space<vmem>>, vector<1x2x32xf32>,
    %280 = vector.extract_strided_slice %273 {offsets = [1, 0, 0], sizes = [1, 2, 32], strides = [1, 1, 1]} : vector<2x2x32xf32> to vector<1x2x32xf32>
    %281 = vector.shape_cast %280 : vector<1x2x32xf32> to vector<2x32xf32>
    %282 = arith.index_cast %246 : i32 to index
    %c0_83 = arith.constant 0 : index
    %c0_84 = arith.constant 0 : index
    %283 = vector.load %arg5[%282, %c0_83, %c0_84] : memref<8x2x32xf32, #tpu.memory_space<vmem>>, vector<1x2x32xf32>
    %284 = vector.shape_cast %283 : vector<1x2x32xf32> to vector<2x32xf32>
    %285 = vector.shape_cast %281 : vector<2x32xf32> to vector<1x2x32xf32>
    tpu.vector_store %arg5[%282, %c0_83, %c0_84], %285 {strides = array<i32>} : memref<8x2x32xf32, #tpu.memory_space<vmem>>, vector<1x2x32xf32>,
    %c7_i32_85 = arith.constant 7 : i32
    %c7_i32_86 = arith.constant 7 : i32
    %286 = arith.subi %c7_i32_86, %c7_i32_85 : i32
    "tpu.trace_start"() <{level = 10 : i32, message = "dbh,dhg->dbg"}> : () -> ()
    %cst_87 = arith.constant dense<0.000000e+00> : vector<2x2x128xf32>
    %287 = tpu.matmul %273, %3, %cst_87 {dimension_numbers = #tpu.dot_dimension_numbers<[2], [1], [1], [2], [0, 0, 0, 1, 1, 2], [0], [0]>} : vector<2x2x32xf32>, vector<2x32x128xf32>, vector<2x2x128xf32> -> vector<2x2x128xf32>
    "tpu.trace_stop"() : () -> ()
    %288 = arith.index_cast %c7_i32_85 : i32 to index
    %c0_88 = arith.constant 0 : index
    %c0_89 = arith.constant 0 : index
    %289 = vector.load %arg1[%288, %c0_88, %c0_89] : memref<8x2x128xf32, #tpu.memory_space<vmem>>, vector<1x2x128xf32>
    %290 = vector.shape_cast %289 : vector<1x2x128xf32> to vector<2x128xf32>
    %291 = arith.index_cast %286 : i32 to index
    %c0_90 = arith.constant 0 : index
    %c0_91 = arith.constant 0 : index
    %292 = vector.load %arg2[%291, %c0_90, %c0_91] : memref<8x2x128xf32, #tpu.memory_space<vmem>>, vector<1x2x128xf32>
    %293 = vector.shape_cast %292 : vector<1x2x128xf32> to vector<2x128xf32>
    %294 = vector.shape_cast %290 : vector<2x128xf32> to vector<1x2x128xf32>
    %295 = vector.shape_cast %293 : vector<2x128xf32> to vector<1x2x128xf32>
    %296 = tpu.concatenate %294, %295 in 0 : vector<1x2x128xf32>, vector<1x2x128xf32> -> vector<2x2x128xf32>
    %297 = arith.addf %287, %296 : vector<2x2x128xf32>
    %298 = vector.extract_strided_slice %297 {offsets = [0, 0, 0], sizes = [2, 2, 96], strides = [1, 1, 1]} : vector<2x2x128xf32> to vector<2x2x96xf32>
    %299 = arith.negf %298 : vector<2x2x96xf32>
    %300 = math.exp %299 : vector<2x2x96xf32>
    %cst_92 = arith.constant 1.000000e+00 : f32
    %301 = vector.broadcast %cst_92 : f32 to vector<2x2x96xf32>
    %302 = arith.addf %301, %300 : vector<2x2x96xf32>
    %303 = arith.divf %301, %302 : vector<2x2x96xf32>
    %304 = vector.extract_strided_slice %297 {offsets = [0, 0, 96], sizes = [2, 2, 32], strides = [1, 1, 1]} : vector<2x2x128xf32> to vector<2x2x32xf32>
    %305 = math.tanh %304 : vector<2x2x32xf32>
    %306 = vector.extract_strided_slice %303 {offsets = [0, 0, 32], sizes = [2, 2, 32], strides = [1, 1, 1]} : vector<2x2x96xf32> to vector<2x2x32xf32>
    %307 = arith.mulf %306, %270 : vector<2x2x32xf32>
    %308 = vector.extract_strided_slice %303 {offsets = [0, 0, 0], sizes = [2, 2, 32], strides = [1, 1, 1]} : vector<2x2x96xf32> to vector<2x2x32xf32>
    %309 = arith.mulf %308, %305 : vector<2x2x32xf32>
    %310 = arith.addf %307, %309 : vector<2x2x32xf32>
    %311 = vector.extract_strided_slice %303 {offsets = [0, 0, 64], sizes = [2, 2, 32], strides = [1, 1, 1]} : vector<2x2x96xf32> to vector<2x2x32xf32>
    %312 = math.tanh %310 : vector<2x2x32xf32>
    %313 = arith.mulf %311, %312 : vector<2x2x32xf32>
    %314 = vector.extract_strided_slice %313 {offsets = [0, 0, 0], sizes = [1, 2, 32], strides = [1, 1, 1]} : vector<2x2x32xf32> to vector<1x2x32xf32>
    %315 = vector.shape_cast %314 : vector<1x2x32xf32> to vector<2x32xf32>
    %316 = arith.index_cast %c7_i32_85 : i32 to index
    %c0_93 = arith.constant 0 : index
    %c0_94 = arith.constant 0 : index
    %317 = vector.load %arg4[%316, %c0_93, %c0_94] : memref<8x2x32xf32, #tpu.memory_space<vmem>>, vector<1x2x32xf32>
    %318 = vector.shape_cast %317 : vector<1x2x32xf32> to vector<2x32xf32>
    %319 = vector.shape_cast %315 : vector<2x32xf32> to vector<1x2x32xf32>
    tpu.vector_store %arg4[%316, %c0_93, %c0_94], %319 {strides = array<i32>} : memref<8x2x32xf32, #tpu.memory_space<vmem>>, vector<1x2x32xf32>,
    %320 = vector.extract_strided_slice %313 {offsets = [1, 0, 0], sizes = [1, 2, 32], strides = [1, 1, 1]} : vector<2x2x32xf32> to vector<1x2x32xf32>
    %321 = vector.shape_cast %320 : vector<1x2x32xf32> to vector<2x32xf32>
    %322 = arith.index_cast %286 : i32 to index
    %c0_95 = arith.constant 0 : index
    %c0_96 = arith.constant 0 : index
    %323 = vector.load %arg5[%322, %c0_95, %c0_96] : memref<8x2x32xf32, #tpu.memory_space<vmem>>, vector<1x2x32xf32>
    %324 = vector.shape_cast %323 : vector<1x2x32xf32> to vector<2x32xf32>
    %325 = vector.shape_cast %321 : vector<2x32xf32> to vector<1x2x32xf32>
    tpu.vector_store %arg5[%322, %c0_95, %c0_96], %325 {strides = array<i32>} : memref<8x2x32xf32, #tpu.memory_space<vmem>>, vector<1x2x32xf32>,
    %c8_i32 = arith.constant 8 : i32
    %c0_97 = arith.constant 0 : index
    %c0_98 = arith.constant 0 : index
    %c0_99 = arith.constant 0 : index
    %326 = vector.load %arg7[%c0_97, %c0_98, %c0_99] : memref<2x2x32xf32, #tpu.memory_space<vmem>>, vector<2x2x32xf32>
    tpu.vector_store %arg7[%c0_97, %c0_98, %c0_99], %313 {strides = array<i32>} : memref<2x2x32xf32, #tpu.memory_space<vmem>>, vector<2x2x32xf32>,
    %c0_100 = arith.constant 0 : index
    %c0_101 = arith.constant 0 : index
    %c0_102 = arith.constant 0 : index
    %327 = vector.load %arg8[%c0_100, %c0_101, %c0_102] : memref<2x2x32xf32, #tpu.memory_space<vmem>>, vector<2x2x32xf32>
    tpu.vector_store %arg8[%c0_100, %c0_101, %c0_102], %310 {strides = array<i32>} : memref<2x2x32xf32, #tpu.memory_space<vmem>>, vector<2x2x32xf32>,
    %c0_i32_103 = arith.constant 0 : i32
    %328 = arith.cmpi eq, %arg0, %c0_i32_103 : i32
    %329 = arith.extui %328 : i1 to i32
    %c0_i32_104 = arith.constant 0 : i32
    %330 = arith.cmpi ne, %329, %c0_i32_104 : i32
    scf.if %330 {
      %c0_105 = arith.constant 0 : index
      %c0_106 = arith.constant 0 : index
      %c0_107 = arith.constant 0 : index
      %331 = vector.load %arg6[%c0_105, %c0_106, %c0_107] : memref<2x2x32xf32, #tpu.memory_space<vmem>>, vector<2x2x32xf32>
      tpu.vector_store %arg6[%c0_105, %c0_106, %c0_107], %310 {strides = array<i32>} : memref<2x2x32xf32, #tpu.memory_space<vmem>>, vector<2x2x32xf32>,
    } else {
    }
    return
  }
  func.func @transform_0(%arg0: i32) -> (i32, i32, i32) {
    %c0_i32 = arith.constant 0 : i32
    %c0_i32_0 = arith.constant 0 : i32
    %c0_i32_1 = arith.constant 0 : i32
    return %arg0, %c0_i32, %c0_i32_0 : i32, i32, i32
  }
  func.func @transform_1(%arg0: i32) -> (i32, i32, i32) {
    %c0_i32 = arith.constant 0 : i32
    %0 = arith.subi %c0_i32, %arg0 : i32
    %c0_i32_0 = arith.constant 0 : i32
    %c0_i32_1 = arith.constant 0 : i32
    %c0_i32_2 = arith.constant 0 : i32
    return %0, %c0_i32_0, %c0_i32_1 : i32, i32, i32
  }
  func.func @transform_2(%arg0: i32) -> (i32, i32, i32) {
    %c0_i32 = arith.constant 0 : i32
    %c0_i32_0 = arith.constant 0 : i32
    %c0_i32_1 = arith.constant 0 : i32
    %c0_i32_2 = arith.constant 0 : i32
    return %c0_i32, %c0_i32_0, %c0_i32_1 : i32, i32, i32
  }
  func.func @transform_3(%arg0: i32) -> (i32, i32, i32) {
    %c0_i32 = arith.constant 0 : i32
    %c0_i32_0 = arith.constant 0 : i32
    %c0_i32_1 = arith.constant 0 : i32
    return %arg0, %c0_i32, %c0_i32_0 : i32, i32, i32
  }
  func.func @transform_4(%arg0: i32) -> (i32, i32, i32) {
    %c0_i32 = arith.constant 0 : i32
    %0 = arith.subi %c0_i32, %arg0 : i32
    %c0_i32_0 = arith.constant 0 : i32
    %c0_i32_1 = arith.constant 0 : i32
    %c0_i32_2 = arith.constant 0 : i32
    return %0, %c0_i32_0, %c0_i32_1 : i32, i32, i32
  }
  func.func @transform_5(%arg0: i32) -> (i32, i32, i32) {
    %c0_i32 = arith.constant 0 : i32
    %c0_i32_0 = arith.constant 0 : i32
    %c0_i32_1 = arith.constant 0 : i32
    %c0_i32_2 = arith.constant 0 : i32
    return %c0_i32, %c0_i32_0, %c0_i32_1 : i32, i32, i32
  }
}

</mosaic_0001>

<llo_original>
// kernel: tpu_custom_call.1
$region0: #{tpu_custom_call.1}
  #allocation0 [shape = 'u32[]', space=smem, size = 0x4, offset = 0x4, fixed_abs, tag = 'smem constant byte address 0x4 - core index']
  #allocation1 [shape = 'u32[72,128]{1,0:T(1,128)}', space=vmem, size = 0x9000, scoped, tag = 'internal scratch']
  #allocation2 [shape = 'f32[2,2,32]{2,1,0:T(2,128)}', space=vmem, size = 0x800, scoped, tag = 'scratch operand']
  #allocation3 [shape = 'f32[2,2,32]{2,1,0:T(2,128)}', space=vmem, size = 0x800, scoped, tag = 'scratch operand']
  %s0 = inlined_call_operand.hbm [shape: f32[8,2,128], index: 0, kind: input, shape index: {}]
  %s1 = inlined_call_operand.hbm [shape: f32[8,2,128], index: 1, kind: input, shape index: {}]
  %s2 = inlined_call_operand.hbm [shape: f32[2,32,128], index: 2, kind: input, shape index: {}]
  %s3 = inlined_call_operand.hbm [shape: f32[8,2,32], index: 3, kind: output, shape index: {0}]
  %s4 = inlined_call_operand.hbm [shape: f32[8,2,32], index: 4, kind: output, shape index: {1}]
  %s5 = inlined_call_operand.hbm [shape: f32[2,2,32], index: 5, kind: output, shape index: {2}]
  %6 = xla_tuple %s3, %s4, %s5
  %s7 = sld [smem:[#allocation0]]
  $region58: #{tpu_custom_call.1} parent=0
    _
  %s9 = ssub.s32 1, %s7
  %s10 = scalar_select 0, %s9, %s7
  $region1: #{tpu_custom_call.1} parent=0
    #allocation4 [shape = 'u8[8192]{0}', space=vmem, size = 0x2000, scoped, tag = 'input window, operand 0, single buffered']
    #allocation5 [shape = 's32[1]{0}', space=sflag, size = 0x4, scoped, tag = 'scoped memory for tpu_custom_call.1']
    #allocation6 [shape = 's32[1]{0}', space=sflag, size = 0x4, scoped, tag = 'scoped memory for tpu_custom_call.1']
    #allocation7 [shape = 'u8[8192]{0}', space=vmem, size = 0x2000, scoped, tag = 'input window, operand 1, single buffered']
    #allocation8 [shape = 's32[1]{0}', space=sflag, size = 0x4, scoped, tag = 'scoped memory for tpu_custom_call.1']
    #allocation9 [shape = 'u8[32768]{0}', space=vmem, size = 0x8000, scoped, tag = 'input window, operand 2, single buffered']
    #allocation10 [shape = 'u8[8192]{0}', space=vmem, size = 0x2000, scoped, tag = 'output window, operand 0, single buffered']
    #allocation11 [shape = 'u8[8192]{0}', space=vmem, size = 0x2000, scoped, tag = 'output window, operand 1, single buffered']
    #allocation12 [shape = 's32[1]{0}', space=sflag, size = 0x4, scoped, tag = 'scoped memory for tpu_custom_call.1']
    #allocation13 [shape = 'u8[2048]{0}', space=vmem, size = 0x800, scoped, tag = 'output window, operand 2, single buffered']
    %11 = vsyncpa [#allocation5], 0
    %12 = vsyncpa [#allocation8], 0
    %13 = vsyncpa [#allocation6], 0
    %14 = vsyncpa [#allocation12], 0
    // Predicated region
    $region2: #{tpu_custom_call.1} parent=1 // pred_check
      _
    $region3: #{tpu_custom_call.1} parent=1 // pred_check_branch
      %16 = sbr.rel (0) target = $region5
    $region4: #{tpu_custom_call.1} parent=1 // pred_region
      %18 = vsyncadd [#allocation5], 0
      %s19 = sshll.u32 %s0, 4
      %s20 = int_to_ptr.hbm [resolvable:$true] %s19
      %s21 = sshll.u32 [#allocation4], 4
      %s22 = int_to_ptr.vmem [resolvable:$true] %s21
      %27 = dma.hbm_to_vmem [thread:$0]  %s20, 256, %s22, [#allocation5], 32, 32, 2
    $region5: #{tpu_custom_call.1} parent=1 // pred_fallthru
      _
    // Predicated region
    $region6: #{tpu_custom_call.1} parent=1 // pred_check
      _
    $region7: #{tpu_custom_call.1} parent=1 // pred_check_branch
      %29 = sbr.rel (0) target = $region9
    $region8: #{tpu_custom_call.1} parent=1 // pred_region
      %s30 = ssub.s32 0, 0
      %s31 = smul.u32 8, %s30
      %33 = vsyncadd [#allocation8], 0
      %s34 = smul.addr %s31, 2
      %s35 = scalar_lea.hbm %s1, %s34
      %s36 = sshll.u32 %s35, 4
      %s37 = int_to_ptr.hbm [resolvable:$true] %s36
      %s38 = sshll.u32 [#allocation7], 4
      %s39 = int_to_ptr.vmem [resolvable:$true] %s38
      %44 = dma.hbm_to_vmem [thread:$0]  %s37, 256, %s39, [#allocation8], 32, 32, 2
    $region9: #{tpu_custom_call.1} parent=1 // pred_fallthru
      _
    // Predicated region
    $region10: #{tpu_custom_call.1} parent=1 // pred_check
      _
    $region11: #{tpu_custom_call.1} parent=1 // pred_check_branch
      %46 = sbr.rel (0) target = $region13
    $region12: #{tpu_custom_call.1} parent=1 // pred_region
      %48 = vsyncadd [#allocation8], 0
      %s49 = sshll.u32 %s2, 4
      %s50 = int_to_ptr.hbm [resolvable:$true] %s49
      %s51 = sshll.u32 [#allocation9], 4
      %s52 = int_to_ptr.vmem [resolvable:$true] %s51
      %57 = dma.hbm_to_vmem [thread:$0]  %s50, 1024, %s52, [#allocation8], 128, 128, 8
    $region13: #{tpu_custom_call.1} parent=1 // pred_fallthru
      _
    // Predicated region
    $region14: #{tpu_custom_call.1} parent=1 // pred_check
      _
    $region15: #{tpu_custom_call.1} parent=1 // pred_check_branch
      %59 = sbr.rel (0) target = $region17
    $region16: #{tpu_custom_call.1} parent=1 // pred_region
      %61 = dma.done [#allocation5], 256
    $region17: #{tpu_custom_call.1} parent=1 // pred_fallthru
      _
    // Predicated region
    $region18: #{tpu_custom_call.1} parent=1 // pred_check
      _
    $region19: #{tpu_custom_call.1} parent=1 // pred_check_branch
      %63 = sbr.rel (0) target = $region21
    $region20: #{tpu_custom_call.1} parent=1 // pred_region
      %65 = dma.done [#allocation8], 256
    $region21: #{tpu_custom_call.1} parent=1 // pred_fallthru
      _
    // Predicated region
    $region22: #{tpu_custom_call.1} parent=1 // pred_check
      _
    $region23: #{tpu_custom_call.1} parent=1 // pred_check_branch
      %67 = sbr.rel (0) target = $region25
    $region24: #{tpu_custom_call.1} parent=1 // pred_region
      %69 = dma.done [#allocation8], 1024
    $region25: #{tpu_custom_call.1} parent=1 // pred_fallthru
      _
    %s70 = ssub.s32 0, 0
    %s71 = smul.u32 8, %s70
    %s72 = ssub.s32 0, 0
    %s73 = smul.u32 8, %s72
    %p74 = scmp.eq.s32.totalorder 0, 0
    // Predicated region
    $region26: #{tpu_custom_call.1} parent=1 // pred_check
      %p75 = pneg %p74
    $region27: #{tpu_custom_call.1} parent=1 // pred_check_branch
      %77 = sbr.rel (%p75) target = $region29
    $region28: #{tpu_custom_call.1} parent=1 // pred_region
      %vm78 = vcmask 254976
      %79 = vst.msk [vmem:[#allocation2] sm:$0x3] %vm78, 0.0
      %80 = vst.msk [vmem:[#allocation2 + $0x2] sm:$0x3] %vm78, 0.0
      %81 = vst.msk [vmem:[#allocation3] sm:$0x3] %vm78, 0.0
      %82 = vst.msk [vmem:[#allocation3 + $0x2] sm:$0x3] %vm78, 0.0
    $region29: #{tpu_custom_call.1} parent=1 // pred_fallthru
      _
    %v83 = vld [vmem:[#allocation9] sm:$0xff]
    %v84 = vld [vmem:[#allocation9 + $0x8] sm:$0xff]
    %v85 = vld [vmem:[#allocation9 + $0x10] sm:$0xff]
    %v86 = vld [vmem:[#allocation9 + $0x18] sm:$0xff]
    %v87 = vld [vmem:[#allocation9 + $0x20] sm:$0xff]
    %v88 = vld [vmem:[#allocation9 + $0x28] sm:$0xff]
    %v89 = vld [vmem:[#allocation9 + $0x30] sm:$0xff]
    %v90 = vld [vmem:[#allocation9 + $0x38] sm:$0xff]
    %v91 = vld [vmem:[#allocation2] sm:$0x3]
    %v92 = vld [vmem:[#allocation2 + $0x2] sm:$0x3]
    %v93 = vld [vmem:[#allocation3] sm:$0x3]
    %v94 = vld [vmem:[#allocation3 + $0x2] sm:$0x3]
    %v95 = vld [vmem:[#allocation4] sm:$0x3]
    %s96 = scalar_lea.vmem [#allocation7], 14
    %v97 = vld [vmem:[%s96] sm:$0x3]
    %vm98 = vcmask 261120
    %v100 = vsel %vm98, %v91, 0
    %102 = vmatpush.msra.mxu0 0.0
    %103 = vmatpush.msra.mxu0 0.0
    %104 = vmatpush.msra.mxu0 0.0
    %105 = vmatpush.msra.mxu0 0.0
    %106 = vmatpush.msra.mxu0 0.0
    %107 = vmatpush.msra.mxu0 0.0
    %108 = vmatpush.msra.mxu0 0.0
    %109 = vmatpush.msra.mxu0 0.0
    %110 = vmatpush.msra.mxu0 0.0
    %111 = vmatpush.msra.mxu0 0.0
    %112 = vmatpush.msra.mxu0 0.0
    %113 = vmatpush.msra.mxu0 0.0
    %114 = vmatpush.msra.mxu0 %v86
    %115 = vmatpush.msra.mxu0 %v85
    %116 = vmatpush.msra.mxu0 %v84
    %117 = vmatpush.msra.mxu0 %v83
    %118 = vmatmul.f32.gmra.mxu0 %v100
    %v119 = vpop.f32.mrf.mxu0
    %v120 = vadd.f32 %v95, %v119
    %121 = vdwg.mxu0
    %v123 = vsel %vm98, %v92, 0
    %125 = vmatpush.msra.mxu0 0.0
    %126 = vmatpush.msra.mxu0 0.0
    %127 = vmatpush.msra.mxu0 0.0
    %128 = vmatpush.msra.mxu0 0.0
    %129 = vmatpush.msra.mxu0 0.0
    %130 = vmatpush.msra.mxu0 0.0
    %131 = vmatpush.msra.mxu0 0.0
    %132 = vmatpush.msra.mxu0 0.0
    %133 = vmatpush.msra.mxu0 0.0
    %134 = vmatpush.msra.mxu0 0.0
    %135 = vmatpush.msra.mxu0 0.0
    %136 = vmatpush.msra.mxu0 0.0
    %137 = vmatpush.msra.mxu0 %v90
    %138 = vmatpush.msra.mxu0 %v89
    %139 = vmatpush.msra.mxu0 %v88
    %140 = vmatpush.msra.mxu0 %v87
    %141 = vmatmul.f32.gmra.mxu0 %v123
    %v142 = vpop.f32.mrf.mxu0
    %v143 = vadd.f32 %v97, %v142
    %144 = vdwg.mxu0
    %v145 = vxor.u32 %v120, 2147483648
    %v146 = vxor.u32 %v143, 2147483648
    %v147 = vmul.f32 %v145, 1.442695
    %v148 = vpow.pop %v147
    %v149 = vmul.f32 %v146, 1.442695
    %v150 = vpow.pop %v149
    %v151 = vadd.f32 %v148, 1.0
    %v152 = vadd.f32 %v150, 1.0
    %v153 = vrcp.pop %v151
    %v154 = vmul.f32 %v151, %v153
    %v155 = vsub.f32 1.0, %v154
    %v156 = vmul.f32 %v153, %v155
    %v157 = vadd.f32 %v153, %v156
    %vm158 = vweird.f32 %v151
    %vm159 = vweird.f32 %v153
    %vm160 = vmor %vm158, %vm159
    %v161 = vsel %vm160, %v153, %v157
    %v162 = vand.u32 2147483647, %v151
    %vm163 = vcmp.eq.f32.partialorder %v162, 8.507059e+37
    %v164 = vand.u32 %v151, 2147483648
    %v165 = vor.u32 1.1754944e-38, %v164
    %v166 = vsel %vm163, %v165, %v161
    %v167 = vmul.f32 1.0, %v166
    %v168 = vrcp.pop %v152
    %v169 = vmul.f32 %v152, %v168
    %v170 = vsub.f32 1.0, %v169
    %v171 = vmul.f32 %v168, %v170
    %v172 = vadd.f32 %v168, %v171
    %vm173 = vweird.f32 %v152
    %vm174 = vweird.f32 %v168
    %vm175 = vmor %vm173, %vm174
    %v176 = vsel %vm175, %v168, %v172
    %v177 = vand.u32 2147483647, %v152
    %vm178 = vcmp.eq.f32.partialorder %v177, 8.507059e+37
    %v179 = vand.u32 %v152, 2147483648
    %v180 = vor.u32 1.1754944e-38, %v179
    %v181 = vsel %vm178, %v180, %v176
    %v182 = vmul.f32 1.0, %v181
    %v183 = vtanh.pop %v120
    %v184 = vtanh.pop %v143
    %187 = vrot.lane.b32.xlu0 %v93, 32
    %v188 = vpop.permute.xlu0 %187
    %189 = vrot.lane.b32.xlu0 %v94, 32
    %v190 = vpop.permute.xlu0 %189
    %v193 = vmul.f32 %v167, %v188
    %v194 = vmul.f32 %v182, %v190
    %197 = vrot.lane.b32.xlu0 %v183, 32
    %v198 = vpop.permute.xlu0 %197
    %199 = vrot.lane.b32.xlu0 %v184, 32
    %v200 = vpop.permute.xlu0 %199
    %v203 = vmul.f32 %v167, %v198
    %v204 = vmul.f32 %v182, %v200
    %207 = vrot.lane.b32.xlu0 %v203, 32
    %v208 = vpop.permute.xlu0 %207
    %209 = vrot.lane.b32.xlu0 %v204, 32
    %v210 = vpop.permute.xlu0 %209
    %v213 = vadd.f32 %v193, %v208
    %v214 = vadd.f32 %v194, %v210
    %v215 = vtanh.pop %v213
    %v216 = vtanh.pop %v214
    %219 = vrot.lane.b32.xlu0 %v215, 32
    %v220 = vpop.permute.xlu0 %219
    %221 = vrot.lane.b32.xlu0 %v216, 32
    %v222 = vpop.permute.xlu0 %221
    %v225 = vmul.f32 %v167, %v220
    %v226 = vmul.f32 %v182, %v222
    %228 = vrot.lane.b32.xlu0 %v225, 64
    %v229 = vpop.permute.xlu0 %228
    %vm231 = vcmask 254976
    %232 = vst.msk [vmem:[#allocation10] sm:$0x3] %vm231, %v229
    %234 = vrot.lane.b32.xlu0 %v226, 64
    %v235 = vpop.permute.xlu0 %234
    %s237 = scalar_lea.vmem [#allocation11], 14
    %238 = vst.msk [vmem:[%s237] sm:$0x3] %vm231, %v235
    %s239 = scalar_lea.vmem [#allocation4], 2
    %v240 = vld [vmem:[%s239] sm:$0x3]
    %s241 = scalar_lea.vmem [#allocation7], 12
    %v242 = vld [vmem:[%s241] sm:$0x3]
    %v243 = vsel %vm98, %v229, 0
    %245 = vmatpush.msra.mxu0 0.0
    %246 = vmatpush.msra.mxu0 0.0
    %247 = vmatpush.msra.mxu0 0.0
    %248 = vmatpush.msra.mxu0 0.0
    %249 = vmatpush.msra.mxu0 0.0
    %250 = vmatpush.msra.mxu0 0.0
    %251 = vmatpush.msra.mxu0 0.0
    %252 = vmatpush.msra.mxu0 0.0
    %253 = vmatpush.msra.mxu0 0.0
    %254 = vmatpush.msra.mxu0 0.0
    %255 = vmatpush.msra.mxu0 0.0
    %256 = vmatpush.msra.mxu0 0.0
    %257 = vmatpush.msra.mxu0 %v86
    %258 = vmatpush.msra.mxu0 %v85
    %259 = vmatpush.msra.mxu0 %v84
    %260 = vmatpush.msra.mxu0 %v83
    %261 = vmatmul.f32.gmra.mxu0 %v243
    %v262 = vpop.f32.mrf.mxu0
    %v263 = vadd.f32 %v240, %v262
    %264 = vdwg.mxu0
    %v265 = vsel %vm98, %v235, 0
    %267 = vmatpush.msra.mxu0 0.0
    %268 = vmatpush.msra.mxu0 0.0
    %269 = vmatpush.msra.mxu0 0.0
    %270 = vmatpush.msra.mxu0 0.0
    %271 = vmatpush.msra.mxu0 0.0
    %272 = vmatpush.msra.mxu0 0.0
    %273 = vmatpush.msra.mxu0 0.0
    %274 = vmatpush.msra.mxu0 0.0
    %275 = vmatpush.msra.mxu0 0.0
    %276 = vmatpush.msra.mxu0 0.0
    %277 = vmatpush.msra.mxu0 0.0
    %278 = vmatpush.msra.mxu0 0.0
    %279 = vmatpush.msra.mxu0 %v90
    %280 = vmatpush.msra.mxu0 %v89
    %281 = vmatpush.msra.mxu0 %v88
    %282 = vmatpush.msra.mxu0 %v87
    %283 = vmatmul.f32.gmra.mxu0 %v265
    %v284 = vpop.f32.mrf.mxu0
    %v285 = vadd.f32 %v242, %v284
    %286 = vdwg.mxu0
    %v287 = vxor.u32 %v263, 2147483648
    %v288 = vxor.u32 %v285, 2147483648
    %v289 = vmul.f32 %v287, 1.442695
    %v290 = vpow.pop %v289
    %v291 = vmul.f32 %v288, 1.442695
    %v292 = vpow.pop %v291
    %v293 = vadd.f32 %v290, 1.0
    %v294 = vadd.f32 %v292, 1.0
    %v295 = vrcp.pop %v293
    %v296 = vmul.f32 %v293, %v295
    %v297 = vsub.f32 1.0, %v296
    %v298 = vmul.f32 %v295, %v297
    %v299 = vadd.f32 %v295, %v298
    %vm300 = vweird.f32 %v293
    %vm301 = vweird.f32 %v295
    %vm302 = vmor %vm300, %vm301
    %v303 = vsel %vm302, %v295, %v299
    %v304 = vand.u32 2147483647, %v293
    %vm305 = vcmp.eq.f32.partialorder %v304, 8.507059e+37
    %v306 = vand.u32 %v293, 2147483648
    %v307 = vor.u32 1.1754944e-38, %v306
    %v308 = vsel %vm305, %v307, %v303
    %v309 = vmul.f32 1.0, %v308
    %v310 = vrcp.pop %v294
    %v311 = vmul.f32 %v294, %v310
    %v312 = vsub.f32 1.0, %v311
    %v313 = vmul.f32 %v310, %v312
    %v314 = vadd.f32 %v310, %v313
    %vm315 = vweird.f32 %v294
    %vm316 = vweird.f32 %v310
    %vm317 = vmor %vm315, %vm316
    %v318 = vsel %vm317, %v310, %v314
    %v319 = vand.u32 2147483647, %v294
    %vm320 = vcmp.eq.f32.partialorder %v319, 8.507059e+37
    %v321 = vand.u32 %v294, 2147483648
    %v322 = vor.u32 1.1754944e-38, %v321
    %v323 = vsel %vm320, %v322, %v318
    %v324 = vmul.f32 1.0, %v323
    %v325 = vtanh.pop %v263
    %v326 = vtanh.pop %v285
    %v327 = vmul.f32 %v309, %v213
    %v328 = vmul.f32 %v324, %v214
    %331 = vrot.lane.b32.xlu0 %v325, 32
    %v332 = vpop.permute.xlu0 %331
    %333 = vrot.lane.b32.xlu0 %v326, 32
    %v334 = vpop.permute.xlu0 %333
    %v337 = vmul.f32 %v309, %v332
    %v338 = vmul.f32 %v324, %v334
    %341 = vrot.lane.b32.xlu0 %v337, 32
    %v342 = vpop.permute.xlu0 %341
    %343 = vrot.lane.b32.xlu0 %v338, 32
    %v344 = vpop.permute.xlu0 %343
    %v347 = vadd.f32 %v327, %v342
    %v348 = vadd.f32 %v328, %v344
    %v349 = vtanh.pop %v347
    %v350 = vtanh.pop %v348
    %353 = vrot.lane.b32.xlu0 %v349, 32
    %v354 = vpop.permute.xlu0 %353
    %355 = vrot.lane.b32.xlu0 %v350, 32
    %v356 = vpop.permute.xlu0 %355
    %v359 = vmul.f32 %v309, %v354
    %v360 = vmul.f32 %v324, %v356
    %362 = vrot.lane.b32.xlu0 %v359, 64
    %v363 = vpop.permute.xlu0 %362
    %s365 = scalar_lea.vmem [#allocation10], 2
    %366 = vst.msk [vmem:[%s365] sm:$0x3] %vm231, %v363
    %368 = vrot.lane.b32.xlu0 %v360, 64
    %v369 = vpop.permute.xlu0 %368
    %s371 = scalar_lea.vmem [#allocation11], 12
    %372 = vst.msk [vmem:[%s371] sm:$0x3] %vm231, %v369
    %s373 = scalar_lea.vmem [#allocation4], 4
    %v374 = vld [vmem:[%s373] sm:$0x3]
    %s375 = scalar_lea.vmem [#allocation7], 10
    %v376 = vld [vmem:[%s375] sm:$0x3]
    %v377 = vsel %vm98, %v363, 0
    %379 = vmatpush.msra.mxu0 0.0
    %380 = vmatpush.msra.mxu0 0.0
    %381 = vmatpush.msra.mxu0 0.0
    %382 = vmatpush.msra.mxu0 0.0
    %383 = vmatpush.msra.mxu0 0.0
    %384 = vmatpush.msra.mxu0 0.0
    %385 = vmatpush.msra.mxu0 0.0
    %386 = vmatpush.msra.mxu0 0.0
    %387 = vmatpush.msra.mxu0 0.0
    %388 = vmatpush.msra.mxu0 0.0
    %389 = vmatpush.msra.mxu0 0.0
    %390 = vmatpush.msra.mxu0 0.0
    %391 = vmatpush.msra.mxu0 %v86
    %392 = vmatpush.msra.mxu0 %v85
    %393 = vmatpush.msra.mxu0 %v84
    %394 = vmatpush.msra.mxu0 %v83
    %395 = vmatmul.f32.gmra.mxu0 %v377
    %v396 = vpop.f32.mrf.mxu0
    %v397 = vadd.f32 %v374, %v396
    %398 = vdwg.mxu0
    %v399 = vsel %vm98, %v369, 0
    %401 = vmatpush.msra.mxu0 0.0
    %402 = vmatpush.msra.mxu0 0.0
    %403 = vmatpush.msra.mxu0 0.0
    %404 = vmatpush.msra.mxu0 0.0
    %405 = vmatpush.msra.mxu0 0.0
    %406 = vmatpush.msra.mxu0 0.0
    %407 = vmatpush.msra.mxu0 0.0
    %408 = vmatpush.msra.mxu0 0.0
    %409 = vmatpush.msra.mxu0 0.0
    %410 = vmatpush.msra.mxu0 0.0
    %411 = vmatpush.msra.mxu0 0.0
    %412 = vmatpush.msra.mxu0 0.0
    %413 = vmatpush.msra.mxu0 %v90
    %414 = vmatpush.msra.mxu0 %v89
    %415 = vmatpush.msra.mxu0 %v88
    %416 = vmatpush.msra.mxu0 %v87
    %417 = vmatmul.f32.gmra.mxu0 %v399
    %v418 = vpop.f32.mrf.mxu0
    %v419 = vadd.f32 %v376, %v418
    %420 = vdwg.mxu0
    %v421 = vxor.u32 %v397, 2147483648
    %v422 = vxor.u32 %v419, 2147483648
    %v423 = vmul.f32 %v421, 1.442695
    %v424 = vpow.pop %v423
    %v425 = vmul.f32 %v422, 1.442695
    %v426 = vpow.pop %v425
    %v427 = vadd.f32 %v424, 1.0
    %v428 = vadd.f32 %v426, 1.0
    %v429 = vrcp.pop %v427
    %v430 = vmul.f32 %v427, %v429
    %v431 = vsub.f32 1.0, %v430
    %v432 = vmul.f32 %v429, %v431
    %v433 = vadd.f32 %v429, %v432
    %vm434 = vweird.f32 %v427
    %vm435 = vweird.f32 %v429
    %vm436 = vmor %vm434, %vm435
    %v437 = vsel %vm436, %v429, %v433
    %v438 = vand.u32 2147483647, %v427
    %vm439 = vcmp.eq.f32.partialorder %v438, 8.507059e+37
    %v440 = vand.u32 %v427, 2147483648
    %v441 = vor.u32 1.1754944e-38, %v440
    %v442 = vsel %vm439, %v441, %v437
    %v443 = vmul.f32 1.0, %v442
    %v444 = vrcp.pop %v428
    %v445 = vmul.f32 %v428, %v444
    %v446 = vsub.f32 1.0, %v445
    %v447 = vmul.f32 %v444, %v446
    %v448 = vadd.f32 %v444, %v447
    %vm449 = vweird.f32 %v428
    %vm450 = vweird.f32 %v444
    %vm451 = vmor %vm449, %vm450
    %v452 = vsel %vm451, %v444, %v448
    %v453 = vand.u32 2147483647, %v428
    %vm454 = vcmp.eq.f32.partialorder %v453, 8.507059e+37
    %v455 = vand.u32 %v428, 2147483648
    %v456 = vor.u32 1.1754944e-38, %v455
    %v457 = vsel %vm454, %v456, %v452
    %v458 = vmul.f32 1.0, %v457
    %v459 = vtanh.pop %v397
    %v460 = vtanh.pop %v419
    %v461 = vmul.f32 %v443, %v347
    %v462 = vmul.f32 %v458, %v348
    %465 = vrot.lane.b32.xlu0 %v459, 32
    %v466 = vpop.permute.xlu0 %465
    %467 = vrot.lane.b32.xlu0 %v460, 32
    %v468 = vpop.permute.xlu0 %467
    %v471 = vmul.f32 %v443, %v466
    %v472 = vmul.f32 %v458, %v468
    %475 = vrot.lane.b32.xlu0 %v471, 32
    %v476 = vpop.permute.xlu0 %475
    %477 = vrot.lane.b32.xlu0 %v472, 32
    %v478 = vpop.permute.xlu0 %477
    %v481 = vadd.f32 %v461, %v476
    %v482 = vadd.f32 %v462, %v478
    %v483 = vtanh.pop %v481
    %v484 = vtanh.pop %v482
    %487 = vrot.lane.b32.xlu0 %v483, 32
    %v488 = vpop.permute.xlu0 %487
    %489 = vrot.lane.b32.xlu0 %v484, 32
    %v490 = vpop.permute.xlu0 %489
    %v493 = vmul.f32 %v443, %v488
    %v494 = vmul.f32 %v458, %v490
    %496 = vrot.lane.b32.xlu0 %v493, 64
    %v497 = vpop.permute.xlu0 %496
    %s499 = scalar_lea.vmem [#allocation10], 4
    %500 = vst.msk [vmem:[%s499] sm:$0x3] %vm231, %v497
    %502 = vrot.lane.b32.xlu0 %v494, 64
    %v503 = vpop.permute.xlu0 %502
    %s505 = scalar_lea.vmem [#allocation11], 10
    %506 = vst.msk [vmem:[%s505] sm:$0x3] %vm231, %v503
    %s507 = scalar_lea.vmem [#allocation4], 6
    %v508 = vld [vmem:[%s507] sm:$0x3]
    %s509 = scalar_lea.vmem [#allocation7], 8
    %v510 = vld [vmem:[%s509] sm:$0x3]
    %v511 = vsel %vm98, %v497, 0
    %513 = vmatpush.msra.mxu0 0.0
    %514 = vmatpush.msra.mxu0 0.0
    %515 = vmatpush.msra.mxu0 0.0
    %516 = vmatpush.msra.mxu0 0.0
    %517 = vmatpush.msra.mxu0 0.0
    %518 = vmatpush.msra.mxu0 0.0
    %519 = vmatpush.msra.mxu0 0.0
    %520 = vmatpush.msra.mxu0 0.0
    %521 = vmatpush.msra.mxu0 0.0
    %522 = vmatpush.msra.mxu0 0.0
    %523 = vmatpush.msra.mxu0 0.0
    %524 = vmatpush.msra.mxu0 0.0
    %525 = vmatpush.msra.mxu0 %v86
    %526 = vmatpush.msra.mxu0 %v85
    %527 = vmatpush.msra.mxu0 %v84
    %528 = vmatpush.msra.mxu0 %v83
    %529 = vmatmul.f32.gmra.mxu0 %v511
    %v530 = vpop.f32.mrf.mxu0
    %v531 = vadd.f32 %v508, %v530
    %532 = vdwg.mxu0
    %v533 = vsel %vm98, %v503, 0
    %535 = vmatpush.msra.mxu0 0.0
    %536 = vmatpush.msra.mxu0 0.0
    %537 = vmatpush.msra.mxu0 0.0
    %538 = vmatpush.msra.mxu0 0.0
    %539 = vmatpush.msra.mxu0 0.0
    %540 = vmatpush.msra.mxu0 0.0
    %541 = vmatpush.msra.mxu0 0.0
    %542 = vmatpush.msra.mxu0 0.0
    %543 = vmatpush.msra.mxu0 0.0
    %544 = vmatpush.msra.mxu0 0.0
    %545 = vmatpush.msra.mxu0 0.0
    %546 = vmatpush.msra.mxu0 0.0
    %547 = vmatpush.msra.mxu0 %v90
    %548 = vmatpush.msra.mxu0 %v89
    %549 = vmatpush.msra.mxu0 %v88
    %550 = vmatpush.msra.mxu0 %v87
    %551 = vmatmul.f32.gmra.mxu0 %v533
    %v552 = vpop.f32.mrf.mxu0
    %v553 = vadd.f32 %v510, %v552
    %554 = vdwg.mxu0
    %v555 = vxor.u32 %v531, 2147483648
    %v556 = vxor.u32 %v553, 2147483648
    %v557 = vmul.f32 %v555, 1.442695
    %v558 = vpow.pop %v557
    %v559 = vmul.f32 %v556, 1.442695
    %v560 = vpow.pop %v559
    %v561 = vadd.f32 %v558, 1.0
    %v562 = vadd.f32 %v560, 1.0
    %v563 = vrcp.pop %v561
    %v564 = vmul.f32 %v561, %v563
    %v565 = vsub.f32 1.0, %v564
    %v566 = vmul.f32 %v563, %v565
    %v567 = vadd.f32 %v563, %v566
    %vm568 = vweird.f32 %v561
    %vm569 = vweird.f32 %v563
    %vm570 = vmor %vm568, %vm569
    %v571 = vsel %vm570, %v563, %v567
    %v572 = vand.u32 2147483647, %v561
    %vm573 = vcmp.eq.f32.partialorder %v572, 8.507059e+37
    %v574 = vand.u32 %v561, 2147483648
    %v575 = vor.u32 1.1754944e-38, %v574
    %v576 = vsel %vm573, %v575, %v571
    %v577 = vmul.f32 1.0, %v576
    %v578 = vrcp.pop %v562
    %v579 = vmul.f32 %v562, %v578
    %v580 = vsub.f32 1.0, %v579
    %v581 = vmul.f32 %v578, %v580
    %v582 = vadd.f32 %v578, %v581
    %vm583 = vweird.f32 %v562
    %vm584 = vweird.f32 %v578
    %vm585 = vmor %vm583, %vm584
    %v586 = vsel %vm585, %v578, %v582
    %v587 = vand.u32 2147483647, %v562
    %vm588 = vcmp.eq.f32.partialorder %v587, 8.507059e+37
    %v589 = vand.u32 %v562, 2147483648
    %v590 = vor.u32 1.1754944e-38, %v589
    %v591 = vsel %vm588, %v590, %v586
    %v592 = vmul.f32 1.0, %v591
    %v593 = vtanh.pop %v531
    %v594 = vtanh.pop %v553
    %v595 = vmul.f32 %v577, %v481
    %v596 = vmul.f32 %v592, %v482
    %599 = vrot.lane.b32.xlu0 %v593, 32
    %v600 = vpop.permute.xlu0 %599
    %601 = vrot.lane.b32.xlu0 %v594, 32
    %v602 = vpop.permute.xlu0 %601
    %v605 = vmul.f32 %v577, %v600
    %v606 = vmul.f32 %v592, %v602
    %609 = vrot.lane.b32.xlu0 %v605, 32
    %v610 = vpop.permute.xlu0 %609
    %611 = vrot.lane.b32.xlu0 %v606, 32
    %v612 = vpop.permute.xlu0 %611
    %v615 = vadd.f32 %v595, %v610
    %v616 = vadd.f32 %v596, %v612
    %v617 = vtanh.pop %v615
    %v618 = vtanh.pop %v616
    %621 = vrot.lane.b32.xlu0 %v617, 32
    %v622 = vpop.permute.xlu0 %621
    %623 = vrot.lane.b32.xlu0 %v618, 32
    %v624 = vpop.permute.xlu0 %623
    %v627 = vmul.f32 %v577, %v622
    %v628 = vmul.f32 %v592, %v624
    %630 = vrot.lane.b32.xlu0 %v627, 64
    %v631 = vpop.permute.xlu0 %630
    %s633 = scalar_lea.vmem [#allocation10], 6
    %634 = vst.msk [vmem:[%s633] sm:$0x3] %vm231, %v631
    %636 = vrot.lane.b32.xlu0 %v628, 64
    %v637 = vpop.permute.xlu0 %636
    %s639 = scalar_lea.vmem [#allocation11], 8
    %640 = vst.msk [vmem:[%s639] sm:$0x3] %vm231, %v637
    %s641 = scalar_lea.vmem [#allocation4], 8
    %v642 = vld [vmem:[%s641] sm:$0x3]
    %s643 = scalar_lea.vmem [#allocation7], 6
    %v644 = vld [vmem:[%s643] sm:$0x3]
    %v645 = vsel %vm98, %v631, 0
    %647 = vmatpush.msra.mxu0 0.0
    %648 = vmatpush.msra.mxu0 0.0
    %649 = vmatpush.msra.mxu0 0.0
    %650 = vmatpush.msra.mxu0 0.0
    %651 = vmatpush.msra.mxu0 0.0
    %652 = vmatpush.msra.mxu0 0.0
    %653 = vmatpush.msra.mxu0 0.0
    %654 = vmatpush.msra.mxu0 0.0
    %655 = vmatpush.msra.mxu0 0.0
    %656 = vmatpush.msra.mxu0 0.0
    %657 = vmatpush.msra.mxu0 0.0
    %658 = vmatpush.msra.mxu0 0.0
    %659 = vmatpush.msra.mxu0 %v86
    %660 = vmatpush.msra.mxu0 %v85
    %661 = vmatpush.msra.mxu0 %v84
    %662 = vmatpush.msra.mxu0 %v83
    %663 = vmatmul.f32.gmra.mxu0 %v645
    %v664 = vpop.f32.mrf.mxu0
    %v665 = vadd.f32 %v642, %v664
    %666 = vdwg.mxu0
    %v667 = vsel %vm98, %v637, 0
    %669 = vmatpush.msra.mxu0 0.0
    %670 = vmatpush.msra.mxu0 0.0
    %671 = vmatpush.msra.mxu0 0.0
    %672 = vmatpush.msra.mxu0 0.0
    %673 = vmatpush.msra.mxu0 0.0
    %674 = vmatpush.msra.mxu0 0.0
    %675 = vmatpush.msra.mxu0 0.0
    %676 = vmatpush.msra.mxu0 0.0
    %677 = vmatpush.msra.mxu0 0.0
    %678 = vmatpush.msra.mxu0 0.0
    %679 = vmatpush.msra.mxu0 0.0
    %680 = vmatpush.msra.mxu0 0.0
    %681 = vmatpush.msra.mxu0 %v90
    %682 = vmatpush.msra.mxu0 %v89
    %683 = vmatpush.msra.mxu0 %v88
    %684 = vmatpush.msra.mxu0 %v87
    %685 = vmatmul.f32.gmra.mxu0 %v667
    %v686 = vpop.f32.mrf.mxu0
    %v687 = vadd.f32 %v644, %v686
    %688 = vdwg.mxu0
    %v689 = vxor.u32 %v665, 2147483648
    %v690 = vxor.u32 %v687, 2147483648
    %v691 = vmul.f32 %v689, 1.442695
    %v692 = vpow.pop %v691
    %v693 = vmul.f32 %v690, 1.442695
    %v694 = vpow.pop %v693
    %v695 = vadd.f32 %v692, 1.0
    %v696 = vadd.f32 %v694, 1.0
    %v697 = vrcp.pop %v695
    %v698 = vmul.f32 %v695, %v697
    %v699 = vsub.f32 1.0, %v698
    %v700 = vmul.f32 %v697, %v699
    %v701 = vadd.f32 %v697, %v700
    %vm702 = vweird.f32 %v695
    %vm703 = vweird.f32 %v697
    %vm704 = vmor %vm702, %vm703
    %v705 = vsel %vm704, %v697, %v701
    %v706 = vand.u32 2147483647, %v695
    %vm707 = vcmp.eq.f32.partialorder %v706, 8.507059e+37
    %v708 = vand.u32 %v695, 2147483648
    %v709 = vor.u32 1.1754944e-38, %v708
    %v710 = vsel %vm707, %v709, %v705
    %v711 = vmul.f32 1.0, %v710
    %v712 = vrcp.pop %v696
    %v713 = vmul.f32 %v696, %v712
    %v714 = vsub.f32 1.0, %v713
    %v715 = vmul.f32 %v712, %v714
    %v716 = vadd.f32 %v712, %v715
    %vm717 = vweird.f32 %v696
    %vm718 = vweird.f32 %v712
    %vm719 = vmor %vm717, %vm718
    %v720 = vsel %vm719, %v712, %v716
    %v721 = vand.u32 2147483647, %v696
    %vm722 = vcmp.eq.f32.partialorder %v721, 8.507059e+37
    %v723 = vand.u32 %v696, 2147483648
    %v724 = vor.u32 1.1754944e-38, %v723
    %v725 = vsel %vm722, %v724, %v720
    %v726 = vmul.f32 1.0, %v725
    %v727 = vtanh.pop %v665
    %v728 = vtanh.pop %v687
    %v729 = vmul.f32 %v711, %v615
    %v730 = vmul.f32 %v726, %v616
    %733 = vrot.lane.b32.xlu0 %v727, 32
    %v734 = vpop.permute.xlu0 %733
    %735 = vrot.lane.b32.xlu0 %v728, 32
    %v736 = vpop.permute.xlu0 %735
    %v739 = vmul.f32 %v711, %v734
    %v740 = vmul.f32 %v726, %v736
    %743 = vrot.lane.b32.xlu0 %v739, 32
    %v744 = vpop.permute.xlu0 %743
    %745 = vrot.lane.b32.xlu0 %v740, 32
    %v746 = vpop.permute.xlu0 %745
    %v749 = vadd.f32 %v729, %v744
    %v750 = vadd.f32 %v730, %v746
    %v751 = vtanh.pop %v749
    %v752 = vtanh.pop %v750
    %755 = vrot.lane.b32.xlu0 %v751, 32
    %v756 = vpop.permute.xlu0 %755
    %757 = vrot.lane.b32.xlu0 %v752, 32
    %v758 = vpop.permute.xlu0 %757
    %v761 = vmul.f32 %v711, %v756
    %v762 = vmul.f32 %v726, %v758
    %764 = vrot.lane.b32.xlu0 %v761, 64
    %v765 = vpop.permute.xlu0 %764
    %s767 = scalar_lea.vmem [#allocation10], 8
    %768 = vst.msk [vmem:[%s767] sm:$0x3] %vm231, %v765
    %770 = vrot.lane.b32.xlu0 %v762, 64
    %v771 = vpop.permute.xlu0 %770
    %s773 = scalar_lea.vmem [#allocation11], 6
    %774 = vst.msk [vmem:[%s773] sm:$0x3] %vm231, %v771
    %s775 = scalar_lea.vmem [#allocation4], 10
    %v776 = vld [vmem:[%s775] sm:$0x3]
    %s777 = scalar_lea.vmem [#allocation7], 4
    %v778 = vld [vmem:[%s777] sm:$0x3]
    %v779 = vsel %vm98, %v765, 0
    %781 = vmatpush.msra.mxu0 0.0
    %782 = vmatpush.msra.mxu0 0.0
    %783 = vmatpush.msra.mxu0 0.0
    %784 = vmatpush.msra.mxu0 0.0
    %785 = vmatpush.msra.mxu0 0.0
    %786 = vmatpush.msra.mxu0 0.0
    %787 = vmatpush.msra.mxu0 0.0
    %788 = vmatpush.msra.mxu0 0.0
    %789 = vmatpush.msra.mxu0 0.0
    %790 = vmatpush.msra.mxu0 0.0
    %791 = vmatpush.msra.mxu0 0.0
    %792 = vmatpush.msra.mxu0 0.0
    %793 = vmatpush.msra.mxu0 %v86
    %794 = vmatpush.msra.mxu0 %v85
    %795 = vmatpush.msra.mxu0 %v84
    %796 = vmatpush.msra.mxu0 %v83
    %797 = vmatmul.f32.gmra.mxu0 %v779
    %v798 = vpop.f32.mrf.mxu0
    %v799 = vadd.f32 %v776, %v798
    %800 = vdwg.mxu0
    %v801 = vsel %vm98, %v771, 0
    %803 = vmatpush.msra.mxu0 0.0
    %804 = vmatpush.msra.mxu0 0.0
    %805 = vmatpush.msra.mxu0 0.0
    %806 = vmatpush.msra.mxu0 0.0
    %807 = vmatpush.msra.mxu0 0.0
    %808 = vmatpush.msra.mxu0 0.0
    %809 = vmatpush.msra.mxu0 0.0
    %810 = vmatpush.msra.mxu0 0.0
    %811 = vmatpush.msra.mxu0 0.0
    %812 = vmatpush.msra.mxu0 0.0
    %813 = vmatpush.msra.mxu0 0.0
    %814 = vmatpush.msra.mxu0 0.0
    %815 = vmatpush.msra.mxu0 %v90
    %816 = vmatpush.msra.mxu0 %v89
    %817 = vmatpush.msra.mxu0 %v88
    %818 = vmatpush.msra.mxu0 %v87
    %819 = vmatmul.f32.gmra.mxu0 %v801
    %v820 = vpop.f32.mrf.mxu0
    %v821 = vadd.f32 %v778, %v820
    %822 = vdwg.mxu0
    %v823 = vxor.u32 %v799, 2147483648
    %v824 = vxor.u32 %v821, 2147483648
    %v825 = vmul.f32 %v823, 1.442695
    %v826 = vpow.pop %v825
    %v827 = vmul.f32 %v824, 1.442695
    %v828 = vpow.pop %v827
    %v829 = vadd.f32 %v826, 1.0
    %v830 = vadd.f32 %v828, 1.0
    %v831 = vrcp.pop %v829
    %v832 = vmul.f32 %v829, %v831
    %v833 = vsub.f32 1.0, %v832
    %v834 = vmul.f32 %v831, %v833
    %v835 = vadd.f32 %v831, %v834
    %vm836 = vweird.f32 %v829
    %vm837 = vweird.f32 %v831
    %vm838 = vmor %vm836, %vm837
    %v839 = vsel %vm838, %v831, %v835
    %v840 = vand.u32 2147483647, %v829
    %vm841 = vcmp.eq.f32.partialorder %v840, 8.507059e+37
    %v842 = vand.u32 %v829, 2147483648
    %v843 = vor.u32 1.1754944e-38, %v842
    %v844 = vsel %vm841, %v843, %v839
    %v845 = vmul.f32 1.0, %v844
    %v846 = vrcp.pop %v830
    %v847 = vmul.f32 %v830, %v846
    %v848 = vsub.f32 1.0, %v847
    %v849 = vmul.f32 %v846, %v848
    %v850 = vadd.f32 %v846, %v849
    %vm851 = vweird.f32 %v830
    %vm852 = vweird.f32 %v846
    %vm853 = vmor %vm851, %vm852
    %v854 = vsel %vm853, %v846, %v850
    %v855 = vand.u32 2147483647, %v830
    %vm856 = vcmp.eq.f32.partialorder %v855, 8.507059e+37
    %v857 = vand.u32 %v830, 2147483648
    %v858 = vor.u32 1.1754944e-38, %v857
    %v859 = vsel %vm856, %v858, %v854
    %v860 = vmul.f32 1.0, %v859
    %v861 = vtanh.pop %v799
    %v862 = vtanh.pop %v821
    %v863 = vmul.f32 %v845, %v749
    %v864 = vmul.f32 %v860, %v750
    %867 = vrot.lane.b32.xlu0 %v861, 32
    %v868 = vpop.permute.xlu0 %867
    %869 = vrot.lane.b32.xlu0 %v862, 32
    %v870 = vpop.permute.xlu0 %869
    %v873 = vmul.f32 %v845, %v868
    %v874 = vmul.f32 %v860, %v870
    %877 = vrot.lane.b32.xlu0 %v873, 32
    %v878 = vpop.permute.xlu0 %877
    %879 = vrot.lane.b32.xlu0 %v874, 32
    %v880 = vpop.permute.xlu0 %879
    %v883 = vadd.f32 %v863, %v878
    %v884 = vadd.f32 %v864, %v880
    %v885 = vtanh.pop %v883
    %v886 = vtanh.pop %v884
    %889 = vrot.lane.b32.xlu0 %v885, 32
    %v890 = vpop.permute.xlu0 %889
    %891 = vrot.lane.b32.xlu0 %v886, 32
    %v892 = vpop.permute.xlu0 %891
    %v895 = vmul.f32 %v845, %v890
    %v896 = vmul.f32 %v860, %v892
    %898 = vrot.lane.b32.xlu0 %v895, 64
    %v899 = vpop.permute.xlu0 %898
    %s901 = scalar_lea.vmem [#allocation10], 10
    %902 = vst.msk [vmem:[%s901] sm:$0x3] %vm231, %v899
    %904 = vrot.lane.b32.xlu0 %v896, 64
    %v905 = vpop.permute.xlu0 %904
    %s907 = scalar_lea.vmem [#allocation11], 4
    %908 = vst.msk [vmem:[%s907] sm:$0x3] %vm231, %v905
    %s909 = scalar_lea.vmem [#allocation4], 12
    %v910 = vld [vmem:[%s909] sm:$0x3]
    %s911 = scalar_lea.vmem [#allocation7], 2
    %v912 = vld [vmem:[%s911] sm:$0x3]
    %v913 = vsel %vm98, %v899, 0
    %915 = vmatpush.msra.mxu0 0.0
    %916 = vmatpush.msra.mxu0 0.0
    %917 = vmatpush.msra.mxu0 0.0
    %918 = vmatpush.msra.mxu0 0.0
    %919 = vmatpush.msra.mxu0 0.0
    %920 = vmatpush.msra.mxu0 0.0
    %921 = vmatpush.msra.mxu0 0.0
    %922 = vmatpush.msra.mxu0 0.0
    %923 = vmatpush.msra.mxu0 0.0
    %924 = vmatpush.msra.mxu0 0.0
    %925 = vmatpush.msra.mxu0 0.0
    %926 = vmatpush.msra.mxu0 0.0
    %927 = vmatpush.msra.mxu0 %v86
    %928 = vmatpush.msra.mxu0 %v85
    %929 = vmatpush.msra.mxu0 %v84
    %930 = vmatpush.msra.mxu0 %v83
    %931 = vmatmul.f32.gmra.mxu0 %v913
    %v932 = vpop.f32.mrf.mxu0
    %v933 = vadd.f32 %v910, %v932
    %934 = vdwg.mxu0
    %v935 = vsel %vm98, %v905, 0
    %937 = vmatpush.msra.mxu0 0.0
    %938 = vmatpush.msra.mxu0 0.0
    %939 = vmatpush.msra.mxu0 0.0
    %940 = vmatpush.msra.mxu0 0.0
    %941 = vmatpush.msra.mxu0 0.0
    %942 = vmatpush.msra.mxu0 0.0
    %943 = vmatpush.msra.mxu0 0.0
    %944 = vmatpush.msra.mxu0 0.0
    %945 = vmatpush.msra.mxu0 0.0
    %946 = vmatpush.msra.mxu0 0.0
    %947 = vmatpush.msra.mxu0 0.0
    %948 = vmatpush.msra.mxu0 0.0
    %949 = vmatpush.msra.mxu0 %v90
    %950 = vmatpush.msra.mxu0 %v89
    %951 = vmatpush.msra.mxu0 %v88
    %952 = vmatpush.msra.mxu0 %v87
    %953 = vmatmul.f32.gmra.mxu0 %v935
    %v954 = vpop.f32.mrf.mxu0
    %v955 = vadd.f32 %v912, %v954
    %956 = vdwg.mxu0
    %v957 = vxor.u32 %v933, 2147483648
    %v958 = vxor.u32 %v955, 2147483648
    %v959 = vmul.f32 %v957, 1.442695
    %v960 = vpow.pop %v959
    %v961 = vmul.f32 %v958, 1.442695
    %v962 = vpow.pop %v961
    %v963 = vadd.f32 %v960, 1.0
    %v964 = vadd.f32 %v962, 1.0
    %v965 = vrcp.pop %v963
    %v966 = vmul.f32 %v963, %v965
    %v967 = vsub.f32 1.0, %v966
    %v968 = vmul.f32 %v965, %v967
    %v969 = vadd.f32 %v965, %v968
    %vm970 = vweird.f32 %v963
    %vm971 = vweird.f32 %v965
    %vm972 = vmor %vm970, %vm971
    %v973 = vsel %vm972, %v965, %v969
    %v974 = vand.u32 2147483647, %v963
    %vm975 = vcmp.eq.f32.partialorder %v974, 8.507059e+37
    %v976 = vand.u32 %v963, 2147483648
    %v977 = vor.u32 1.1754944e-38, %v976
    %v978 = vsel %vm975, %v977, %v973
    %v979 = vmul.f32 1.0, %v978
    %v980 = vrcp.pop %v964
    %v981 = vmul.f32 %v964, %v980
    %v982 = vsub.f32 1.0, %v981
    %v983 = vmul.f32 %v980, %v982
    %v984 = vadd.f32 %v980, %v983
    %vm985 = vweird.f32 %v964
    %vm986 = vweird.f32 %v980
    %vm987 = vmor %vm985, %vm986
    %v988 = vsel %vm987, %v980, %v984
    %v989 = vand.u32 2147483647, %v964
    %vm990 = vcmp.eq.f32.partialorder %v989, 8.507059e+37
    %v991 = vand.u32 %v964, 2147483648
    %v992 = vor.u32 1.1754944e-38, %v991
    %v993 = vsel %vm990, %v992, %v988
    %v994 = vmul.f32 1.0, %v993
    %v995 = vtanh.pop %v933
    %v996 = vtanh.pop %v955
    %v997 = vmul.f32 %v979, %v883
    %v998 = vmul.f32 %v994, %v884
    %1001 = vrot.lane.b32.xlu0 %v995, 32
    %v1002 = vpop.permute.xlu0 %1001
    %1003 = vrot.lane.b32.xlu0 %v996, 32
    %v1004 = vpop.permute.xlu0 %1003
    %v1007 = vmul.f32 %v979, %v1002
    %v1008 = vmul.f32 %v994, %v1004
    %1011 = vrot.lane.b32.xlu0 %v1007, 32
    %v1012 = vpop.permute.xlu0 %1011
    %1013 = vrot.lane.b32.xlu0 %v1008, 32
    %v1014 = vpop.permute.xlu0 %1013
    %v1017 = vadd.f32 %v997, %v1012
    %v1018 = vadd.f32 %v998, %v1014
    %v1019 = vtanh.pop %v1017
    %v1020 = vtanh.pop %v1018
    %1023 = vrot.lane.b32.xlu0 %v1019, 32
    %v1024 = vpop.permute.xlu0 %1023
    %1025 = vrot.lane.b32.xlu0 %v1020, 32
    %v1026 = vpop.permute.xlu0 %1025
    %v1029 = vmul.f32 %v979, %v1024
    %v1030 = vmul.f32 %v994, %v1026
    %1032 = vrot.lane.b32.xlu0 %v1029, 64
    %v1033 = vpop.permute.xlu0 %1032
    %s1035 = scalar_lea.vmem [#allocation10], 12
    %1036 = vst.msk [vmem:[%s1035] sm:$0x3] %vm231, %v1033
    %1038 = vrot.lane.b32.xlu0 %v1030, 64
    %v1039 = vpop.permute.xlu0 %1038
    %s1041 = scalar_lea.vmem [#allocation11], 2
    %1042 = vst.msk [vmem:[%s1041] sm:$0x3] %vm231, %v1039
    %s1043 = scalar_lea.vmem [#allocation4], 14
    %v1044 = vld [vmem:[%s1043] sm:$0x3]
    %v1045 = vld [vmem:[#allocation7] sm:$0x3]
    %v1046 = vsel %vm98, %v1033, 0
    %1048 = vmatpush.msra.mxu0 0.0
    %1049 = vmatpush.msra.mxu0 0.0
    %1050 = vmatpush.msra.mxu0 0.0
    %1051 = vmatpush.msra.mxu0 0.0
    %1052 = vmatpush.msra.mxu0 0.0
    %1053 = vmatpush.msra.mxu0 0.0
    %1054 = vmatpush.msra.mxu0 0.0
    %1055 = vmatpush.msra.mxu0 0.0
    %1056 = vmatpush.msra.mxu0 0.0
    %1057 = vmatpush.msra.mxu0 0.0
    %1058 = vmatpush.msra.mxu0 0.0
    %1059 = vmatpush.msra.mxu0 0.0
    %1060 = vmatpush.msra.mxu0 %v86
    %1061 = vmatpush.msra.mxu0 %v85
    %1062 = vmatpush.msra.mxu0 %v84
    %1063 = vmatpush.msra.mxu0 %v83
    %1064 = vmatmul.f32.gmra.mxu0 %v1046
    %v1065 = vpop.f32.mrf.mxu0
    %v1066 = vadd.f32 %v1044, %v1065
    %1067 = vdwg.mxu0
    %v1068 = vsel %vm98, %v1039, 0
    %1070 = vmatpush.msra.mxu0 0.0
    %1071 = vmatpush.msra.mxu0 0.0
    %1072 = vmatpush.msra.mxu0 0.0
    %1073 = vmatpush.msra.mxu0 0.0
    %1074 = vmatpush.msra.mxu0 0.0
    %1075 = vmatpush.msra.mxu0 0.0
    %1076 = vmatpush.msra.mxu0 0.0
    %1077 = vmatpush.msra.mxu0 0.0
    %1078 = vmatpush.msra.mxu0 0.0
    %1079 = vmatpush.msra.mxu0 0.0
    %1080 = vmatpush.msra.mxu0 0.0
    %1081 = vmatpush.msra.mxu0 0.0
    %1082 = vmatpush.msra.mxu0 %v90
    %1083 = vmatpush.msra.mxu0 %v89
    %1084 = vmatpush.msra.mxu0 %v88
    %1085 = vmatpush.msra.mxu0 %v87
    %1086 = vmatmul.f32.gmra.mxu0 %v1068
    %v1087 = vpop.f32.mrf.mxu0
    %v1088 = vadd.f32 %v1045, %v1087
    %1089 = vdwg.mxu0
    %v1090 = vxor.u32 %v1066, 2147483648
    %v1091 = vxor.u32 %v1088, 2147483648
    %v1092 = vmul.f32 %v1090, 1.442695
    %v1093 = vpow.pop %v1092
    %v1094 = vmul.f32 %v1091, 1.442695
    %v1095 = vpow.pop %v1094
    %v1096 = vadd.f32 %v1093, 1.0
    %v1097 = vadd.f32 %v1095, 1.0
    %v1098 = vrcp.pop %v1096
    %v1099 = vmul.f32 %v1096, %v1098
    %v1100 = vsub.f32 1.0, %v1099
    %v1101 = vmul.f32 %v1098, %v1100
    %v1102 = vadd.f32 %v1098, %v1101
    %vm1103 = vweird.f32 %v1096
    %vm1104 = vweird.f32 %v1098
    %vm1105 = vmor %vm1103, %vm1104
    %v1106 = vsel %vm1105, %v1098, %v1102
    %v1107 = vand.u32 2147483647, %v1096
    %vm1108 = vcmp.eq.f32.partialorder %v1107, 8.507059e+37
    %v1109 = vand.u32 %v1096, 2147483648
    %v1110 = vor.u32 1.1754944e-38, %v1109
    %v1111 = vsel %vm1108, %v1110, %v1106
    %v1112 = vmul.f32 1.0, %v1111
    %v1113 = vrcp.pop %v1097
    %v1114 = vmul.f32 %v1097, %v1113
    %v1115 = vsub.f32 1.0, %v1114
    %v1116 = vmul.f32 %v1113, %v1115
    %v1117 = vadd.f32 %v1113, %v1116
    %vm1118 = vweird.f32 %v1097
    %vm1119 = vweird.f32 %v1113
    %vm1120 = vmor %vm1118, %vm1119
    %v1121 = vsel %vm1120, %v1113, %v1117
    %v1122 = vand.u32 2147483647, %v1097
    %vm1123 = vcmp.eq.f32.partialorder %v1122, 8.507059e+37
    %v1124 = vand.u32 %v1097, 2147483648
    %v1125 = vor.u32 1.1754944e-38, %v1124
    %v1126 = vsel %vm1123, %v1125, %v1121
    %v1127 = vmul.f32 1.0, %v1126
    %v1128 = vtanh.pop %v1066
    %v1129 = vtanh.pop %v1088
    %v1130 = vmul.f32 %v1112, %v1017
    %v1131 = vmul.f32 %v1127, %v1018
    %1134 = vrot.lane.b32.xlu0 %v1128, 32
    %v1135 = vpop.permute.xlu0 %1134
    %1136 = vrot.lane.b32.xlu0 %v1129, 32
    %v1137 = vpop.permute.xlu0 %1136
    %v1140 = vmul.f32 %v1112, %v1135
    %v1141 = vmul.f32 %v1127, %v1137
    %1144 = vrot.lane.b32.xlu0 %v1140, 32
    %v1145 = vpop.permute.xlu0 %1144
    %1146 = vrot.lane.b32.xlu0 %v1141, 32
    %v1147 = vpop.permute.xlu0 %1146
    %v1150 = vadd.f32 %v1130, %v1145
    %v1151 = vadd.f32 %v1131, %v1147
    %v1152 = vtanh.pop %v1150
    %v1153 = vtanh.pop %v1151
    %1156 = vrot.lane.b32.xlu0 %v1152, 32
    %v1157 = vpop.permute.xlu0 %1156
    %1158 = vrot.lane.b32.xlu0 %v1153, 32
    %v1159 = vpop.permute.xlu0 %1158
    %v1162 = vmul.f32 %v1112, %v1157
    %v1163 = vmul.f32 %v1127, %v1159
    %1165 = vrot.lane.b32.xlu0 %v1162, 64
    %v1166 = vpop.permute.xlu0 %1165
    %s1168 = scalar_lea.vmem [#allocation10], 14
    %1169 = vst.msk [vmem:[%s1168] sm:$0x3] %vm231, %v1166
    %1171 = vrot.lane.b32.xlu0 %v1163, 64
    %v1172 = vpop.permute.xlu0 %1171
    %1174 = vst.msk [vmem:[#allocation11] sm:$0x3] %vm231, %v1172
    %1175 = vst.msk [vmem:[#allocation2] sm:$0x3] %vm231, %v1166
    %1176 = vst.msk [vmem:[#allocation2 + $0x2] sm:$0x3] %vm231, %v1172
    %1179 = vrot.lane.b32.xlu0 %v1150, 96
    %v1180 = vpop.permute.xlu0 %1179
    %1181 = vrot.lane.b32.xlu0 %v1151, 96
    %v1182 = vpop.permute.xlu0 %1181
    %1185 = vst.msk [vmem:[#allocation3] sm:$0x3] %vm231, %v1180
    %1186 = vst.msk [vmem:[#allocation3 + $0x2] sm:$0x3] %vm231, %v1182
    // Predicated region
    $region30: #{tpu_custom_call.1} parent=1 // pred_check
      %p1187 = pneg %p74
    $region31: #{tpu_custom_call.1} parent=1 // pred_check_branch
      %1189 = sbr.rel (%p1187) target = $region33
    $region32: #{tpu_custom_call.1} parent=1 // pred_region
      %1190 = vst.msk [vmem:[#allocation13] sm:$0x3] %vm231, %v1180
      %1191 = vst.msk [vmem:[#allocation13 + $0x2] sm:$0x3] %vm231, %v1182
    $region33: #{tpu_custom_call.1} parent=1 // pred_fallthru
      _
    // Predicated region
    $region34: #{tpu_custom_call.1} parent=1 // pred_check
      _
    $region35: #{tpu_custom_call.1} parent=1 // pred_check_branch
      %1193 = sbr.rel (0) target = $region37
    $region36: #{tpu_custom_call.1} parent=1 // pred_region
      %1195 = vsyncadd [#allocation6], 0
      %s1196 = sshll.u32 [#allocation10], 4
      %s1197 = int_to_ptr.vmem [resolvable:$true] %s1196
      %s1198 = sshll.u32 %s3, 4
      %s1199 = int_to_ptr.hbm [resolvable:$true] %s1198
      %1204 = dma.vmem_to_hbm [thread:$0]  %s1197, 256, %s1199, [#allocation6], 32, 32, 2
    $region37: #{tpu_custom_call.1} parent=1 // pred_fallthru
      _
    // Predicated region
    $region38: #{tpu_custom_call.1} parent=1 // pred_check
      _
    $region39: #{tpu_custom_call.1} parent=1 // pred_check_branch
      %1206 = sbr.rel (0) target = $region41
    $region40: #{tpu_custom_call.1} parent=1 // pred_region
      %s1207 = ssub.s32 0, 0
      %s1208 = smul.u32 8, %s1207
      %1210 = vsyncadd [#allocation12], 0
      %s1211 = smul.addr %s1208, 2
      %s1212 = scalar_lea.hbm %s4, %s1211
      %s1213 = sshll.u32 [#allocation11], 4
      %s1214 = int_to_ptr.vmem [resolvable:$true] %s1213
      %s1215 = sshll.u32 %s1212, 4
      %s1216 = int_to_ptr.hbm [resolvable:$true] %s1215
      %1221 = dma.vmem_to_hbm [thread:$0]  %s1214, 256, %s1216, [#allocation12], 32, 32, 2
    $region41: #{tpu_custom_call.1} parent=1 // pred_fallthru
      _
    // Predicated region
    $region42: #{tpu_custom_call.1} parent=1 // pred_check
      _
    $region43: #{tpu_custom_call.1} parent=1 // pred_check_branch
      %1223 = sbr.rel (0) target = $region45
    $region44: #{tpu_custom_call.1} parent=1 // pred_region
      %1225 = vsyncadd [#allocation12], 0
      %s1226 = sshll.u32 [#allocation13], 4
      %s1227 = int_to_ptr.vmem [resolvable:$true] %s1226
      %s1228 = sshll.u32 %s5, 4
      %s1229 = int_to_ptr.hbm [resolvable:$true] %s1228
      %1234 = dma.vmem_to_hbm [thread:$0]  %s1227, 64, %s1229, [#allocation12], 32, 32, 2
    $region45: #{tpu_custom_call.1} parent=1 // pred_fallthru
      _
    // Predicated region
    $region46: #{tpu_custom_call.1} parent=1 // pred_check
      _
    $region47: #{tpu_custom_call.1} parent=1 // pred_check_branch
      %1236 = sbr.rel (0) target = $region49
    $region48: #{tpu_custom_call.1} parent=1 // pred_region
      %1238 = dma.done [#allocation6], 256
    $region49: #{tpu_custom_call.1} parent=1 // pred_fallthru
      _
    // Predicated region
    $region50: #{tpu_custom_call.1} parent=1 // pred_check
      _
    $region51: #{tpu_custom_call.1} parent=1 // pred_check_branch
      %1240 = sbr.rel (0) target = $region53
    $region52: #{tpu_custom_call.1} parent=1 // pred_region
      %1242 = dma.done [#allocation12], 256
    $region53: #{tpu_custom_call.1} parent=1 // pred_fallthru
      _
    // Predicated region
    $region54: #{tpu_custom_call.1} parent=1 // pred_check
      _
    $region55: #{tpu_custom_call.1} parent=1 // pred_check_branch
      %1244 = sbr.rel (0) target = $region57
    $region56: #{tpu_custom_call.1} parent=1 // pred_region
      %1246 = dma.done [#allocation12], 64
    $region57: #{tpu_custom_call.1} parent=1 // pred_fallthru
      _
    %1247 = vsyncpa [#allocation5], 1
    %1248 = vsyncpa [#allocation8], 1
    %1249 = vsyncpa [#allocation6], 1
    %1250 = vsyncpa [#allocation12], 1

</llo_original>
